<compile_context>
chip_gen: v7x
topology: tpu7x:2x2x1
jax: 0.10.0
libtpu: 0.0.40
codegen_flags: <defaults>
</compile_context>

<pallas_src>
import functools

import jax
import jax.numpy as jnp
from jax.experimental import pallas as pl
from jax.experimental.pallas import tpu as pltpu


def _round_up(x, m):
    return (x + m - 1) // m * m


# ----------------------------------------------------------------------------
# Kernel: full MLP chain on one batch tile; per-layer-shaped matmuls in VMEM.
#   refs = (x_ref, w0, b0, w1, b1, ..., w_{L-1}, b_{L-1}, out_ref)
#   x_ref : (tile_m, fi0_pad)        bf16
#   w_l   : (fi_pad_l, fo_pad_l)     bf16   (zero padded)
#   b_l   : (1, fo_pad_l)            f32    (zero padded)
#   out   : (tile_m, fo_pad_{L-1})   x.dtype
# ----------------------------------------------------------------------------
def ff_autoencoder_kernel(*refs, n_layers, activations):
    x_ref = refs[0]
    out_ref = refs[-1]
    param_refs = refs[1:-1]

    h_mm = x_ref[...]                                   # bf16 MXU operand
    acc = None
    for li in range(n_layers):
        w_ref = param_refs[2 * li]
        b_ref = param_refs[2 * li + 1]
        acc = jnp.dot(h_mm, w_ref[...], preferred_element_type=jnp.float32)
        acc = acc + b_ref[...]                          # (1, fo_pad) broadcast
        act = activations[li]
        if act == "relu":
            acc = jnp.maximum(acc, 0.0)
        elif act == "sigmoid":
            # exp on the EUP + approx reciprocal on the EUP (free vs VPU/MXU).
            acc = pl.reciprocal(1.0 + jnp.exp(-acc), approx=True)
        # act == "none": identity
        if li + 1 < n_layers:
            h_mm = acc.astype(jnp.bfloat16)             # back to MXU dtype
    out_ref[...] = acc.astype(out_ref.dtype)


# ----------------------------------------------------------------------------
# One-time parameter prepacking: per-layer zero-padded bf16 weights, f32 biases.
# ----------------------------------------------------------------------------
def prepack_ff_autoencoder_params(weights, biases, *, lane_mult=128):
    packed_w, packed_b = [], []
    for w, b in zip(weights, biases):
        fi, fo = w.shape
        fi_pad = _round_up(fi, lane_mult)
        fo_pad = _round_up(fo, lane_mult)
        wp = jnp.zeros((fi_pad, fo_pad), jnp.bfloat16).at[:fi, :fo].set(
            w.astype(jnp.bfloat16))
        bp = jnp.zeros((1, fo_pad), jnp.float32).at[0, :fo].set(
            b.astype(jnp.float32))
        packed_w.append(wp)
        packed_b.append(bp)
    return packed_w, packed_b


def _choose_tile_m(b_pad):
    # Multiples of 16 rows (bf16 sublane packing), <= 512 rows per tile, and
    # >= 2 grid steps whenever the batch allows it (so 2-TC chips shard work).
    if b_pad <= 16:
        return b_pad                      # already a multiple of 8
    if b_pad <= 32:
        return 16
    half = _round_up((b_pad + 1) // 2, 16)
    return min(512, half)


# ----------------------------------------------------------------------------
# Wrapper: pad batch/input lanes, build grid, call Pallas, slice padding away.
# ----------------------------------------------------------------------------
def ff_autoencoder_forward(x, packed_weights, packed_biases, activations,
                           out_features, *, tile_m=None):
    B, F_in = x.shape
    n_layers = len(packed_weights)
    fi0_pad = packed_weights[0].shape[0]
    fo_last_pad = packed_weights[-1].shape[1]
    assert F_in <= fi0_pad and out_features <= fo_last_pad

    # Batch tiling.
    B_pad = _round_up(B, 8)
    if tile_m is None:
        tile_m = _choose_tile_m(B_pad)
    tile_m = _round_up(int(tile_m), 8)
    B_pad = _round_up(B_pad, tile_m)

    # Lane-dense, zero-padded bf16 input.
    x_pad = jnp.zeros((B_pad, fi0_pad), jnp.bfloat16).at[:B, :F_in].set(
        x.astype(jnp.bfloat16))

    kernel = functools.partial(
        ff_autoencoder_kernel, n_layers=n_layers,
        activations=tuple(activations))

    # VMEM budget (bytes): double-buffered x / out tiles, parameter buffers
    # (worst case double-buffered), plus live f32 activation headroom.
    w_bytes = sum(int(w.size) * 2 for w in packed_weights)
    b_bytes = sum(int(b.size) * 4 for b in packed_biases)
    max_pad = max([fi0_pad] + [w.shape[1] for w in packed_weights])
    est = (2 * tile_m * fi0_pad * 2
           + 2 * tile_m * fo_last_pad * x.dtype.itemsize
           + 2 * (w_bytes + b_bytes)
           + 3 * tile_m * max_pad * 4)
    try:
        vmem_cap = int(0.8 * pltpu.get_tpu_info().vmem_capacity_bytes)
    except Exception:
        vmem_cap = 48 * 1024 * 1024       # safe on every TPU generation
    vmem_limit = int(min(vmem_cap, max(32 * 1024 * 1024, 2 * est)))

    grid = (B_pad // tile_m,)
    out_shape = jax.ShapeDtypeStruct((B_pad, fo_last_pad), x.dtype)

    def make_call(single_buffer_params):
        in_specs = [pl.BlockSpec((tile_m, fi0_pad), lambda i: (i, 0))]
        for w, b in zip(packed_weights, packed_biases):
            if single_buffer_params:
                in_specs.append(pl.BlockSpec(tuple(w.shape), lambda i: (0, 0),
                                             pipeline_mode=pl.Buffered(1)))
                in_specs.append(pl.BlockSpec(tuple(b.shape), lambda i: (0, 0),
                                             pipeline_mode=pl.Buffered(1)))
            else:
                in_specs.append(pl.BlockSpec(tuple(w.shape), lambda i: (0, 0)))
                in_specs.append(pl.BlockSpec(tuple(b.shape), lambda i: (0, 0)))
        return pl.pallas_call(
            kernel,
            out_shape=out_shape,
            grid_spec=pltpu.PrefetchScalarGridSpec(
                num_scalar_prefetch=0,
                grid=grid,
                in_specs=in_specs,
                out_specs=pl.BlockSpec((tile_m, fo_last_pad),
                                       lambda i: (i, 0)),
            ),
            compiler_params=pltpu.CompilerParams(
                dimension_semantics=("parallel",),
                vmem_limit_bytes=vmem_limit,
            ),
        )

    args = [x_pad]
    for w, b in zip(packed_weights, packed_biases):
        args.extend((w, b))

    try:
        # Preferred path: constant-index params single-buffered (halves their
        # VMEM footprint; important on v7x's 64 MiB VMEM).
        out_pad = make_call(True)(*args)
    except Exception:
        # Fallback: default double-buffering (still fetched only once since
        # the block index never changes).
        out_pad = make_call(False)(*args)

    # Slice away padded batch rows and padded feature lanes (final sigmoid
    # maps padded lanes to 0.5) so padding is never observed.
    return out_pad[:B, :out_features]


# ----------------------------------------------------------------------------
# Parameter construction (deterministic, PyTorch-nn.Linear-like uniform init).
# Mirrors FFAutoencoder.__prepare_layers (ReLU placement and final Sigmoid).
# ----------------------------------------------------------------------------
def make_ff_autoencoder_params(key, in_features, latent_dim, hidden_dimensions):
    h = list(hidden_dimensions)

    enc_dims = [(in_features, h[0])]
    enc_acts = ["none"]
    for i in range(1, len(h)):
        enc_dims.append((h[i - 1], h[i]))
        enc_acts.append("relu")
    enc_dims.append((h[-1], latent_dim))
    enc_acts.append("none")

    dec_dims = [(latent_dim, h[-1])]
    dec_acts = ["none"]
    for i in range(len(h) - 1, 0, -1):
        dec_dims.append((h[i], h[i - 1]))
        dec_acts.append("relu")
    dec_dims.append((h[0], in_features))
    dec_acts.append("sigmoid")

    dims = enc_dims + dec_dims
    acts = enc_acts + dec_acts

    weights, biases = [], []
    for (fan_in, fan_out) in dims:
        key, kw, kb = jax.random.split(key, 3)
        bound = 1.0 / jnp.sqrt(jnp.float32(fan_in))
        w = jax.random.uniform(kw, (fan_in, fan_out), jnp.float32, -bound, bound)
        b = jax.random.uniform(kb, (fan_out,), jnp.float32, -bound, bound)
        weights.append(w)
        biases.append(b)
    return weights, biases, acts


# ----------------------------------------------------------------------------
# Pure-JAX references.
# ----------------------------------------------------------------------------
def ff_autoencoder_ref_f32(x, weights, biases, activations):
    h = x.astype(jnp.float32)
    for w, b, act in zip(weights, biases, activations):
        h = h @ w + b
        if act == "relu":
            h = jnp.maximum(h, 0.0)
        elif act == "sigmoid":
            h = jax.nn.sigmoid(h)
    return h.astype(x.dtype)


def ff_autoencoder_ref_bf16(x, weights, biases, activations):
    # Matches the kernel's numerics: bf16 matmul operands, f32 accumulation,
    # f32 bias/activation (sigmoid via exact jax.nn.sigmoid).
    h = x.astype(jnp.bfloat16)
    out = None
    for w, b, act in zip(weights, biases, activations):
        out = jnp.dot(h, w.astype(jnp.bfloat16),
                      preferred_element_type=jnp.float32)
        out = out + b.astype(jnp.float32)
        if act == "relu":
            out = jnp.maximum(out, 0.0)
        elif act == "sigmoid":
            out = jax.nn.sigmoid(out)
        h = out.astype(jnp.bfloat16)
    return out.astype(x.dtype)


if __name__ == "__main__":
    in_features = 16
    latent_dim = 8
    hidden_dimensions = [32, 24]
    batch = 32          # padded batch tiles into 2 grid steps of 16 rows

    key = jax.random.PRNGKey(0)
    key, kx = jax.random.split(key)
    x = jax.random.uniform(kx, (batch, in_features), jnp.float32)

    weights, biases, activations = make_ff_autoencoder_params(
        key, in_features, latent_dim, hidden_dimensions)

    # Pad/pack parameters ONCE, outside the per-call path.
    packed_w, packed_b = prepack_ff_autoencoder_params(weights, biases)

    out = ff_autoencoder_forward(x, packed_w, packed_b, activations,
                                 out_features=in_features)
    out = jax.block_until_ready(out)
    assert out.shape == (batch, in_features), out.shape

    ref16 = ff_autoencoder_ref_bf16(x, weights, biases, activations)
    ref32 = ff_autoencoder_ref_f32(x, weights, biases, activations)
    # 5e-3 headroom vs the bf16-matched reference covers the approx EUP
    # reciprocal used for the final sigmoid; 5e-2 vs the pure-f32 reference is
    # the documented bf16-operand numerics contract.
    assert jnp.allclose(out, ref16, atol=5e-3, rtol=5e-3), \
        "mismatch vs bf16-matched reference"
    assert jnp.allclose(out, ref32, atol=5e-2, rtol=5e-2), \
        "mismatch vs f32 reference"

    print("KERNEL_OK")
</pallas_src>

<mosaic_0001>
module attributes {stable_mosaic.version = 11 : i64} {
  func.func @ff_autoencoder_kernel(%arg0: i32, %arg1: memref<16x128xbf16, #tpu.memory_space<vmem>>, %arg2: memref<128x128xbf16, #tpu.memory_space<vmem>>, %arg3: memref<1x128xf32, #tpu.memory_space<vmem>>, %arg4: memref<128x128xbf16, #tpu.memory_space<vmem>>, %arg5: memref<1x128xf32, #tpu.memory_space<vmem>>, %arg6: memref<128x128xbf16, #tpu.memory_space<vmem>>, %arg7: memref<1x128xf32, #tpu.memory_space<vmem>>, %arg8: memref<128x128xbf16, #tpu.memory_space<vmem>>, %arg9: memref<1x128xf32, #tpu.memory_space<vmem>>, %arg10: memref<128x128xbf16, #tpu.memory_space<vmem>>, %arg11: memref<1x128xf32, #tpu.memory_space<vmem>>, %arg12: memref<128x128xbf16, #tpu.memory_space<vmem>>, %arg13: memref<1x128xf32, #tpu.memory_space<vmem>>, %arg14: memref<16x128xf32, #tpu.memory_space<vmem>>) attributes {dimension_semantics = [#tpu.dimension_semantics<parallel>], iteration_bounds = array<i64: 2>, scalar_prefetch = 0 : i64, scratch_operands = 0 : i64, tpu.core_type = #tpu.core_type<tc>, window_params = [{transform_indices = @transform_0, window_bounds = array<i64: 16, 128>}, {pipeline_mode = #tpu.pipeline_mode<synchronous>, transform_indices = @transform_1, window_bounds = array<i64: 128, 128>}, {pipeline_mode = #tpu.pipeline_mode<synchronous>, transform_indices = @transform_2, window_bounds = array<i64: 1, 128>}, {pipeline_mode = #tpu.pipeline_mode<synchronous>, transform_indices = @transform_3, window_bounds = array<i64: 128, 128>}, {pipeline_mode = #tpu.pipeline_mode<synchronous>, transform_indices = @transform_4, window_bounds = array<i64: 1, 128>}, {pipeline_mode = #tpu.pipeline_mode<synchronous>, transform_indices = @transform_5, window_bounds = array<i64: 128, 128>}, {pipeline_mode = #tpu.pipeline_mode<synchronous>, transform_indices = @transform_6, window_bounds = array<i64: 1, 128>}, {pipeline_mode = #tpu.pipeline_mode<synchronous>, transform_indices = @transform_7, window_bounds = array<i64: 128, 128>}, {pipeline_mode = #tpu.pipeline_mode<synchronous>, transform_indices = @transform_8, window_bounds = array<i64: 1, 128>}, {pipeline_mode = #tpu.pipeline_mode<synchronous>, transform_indices = @transform_9, window_bounds = array<i64: 128, 128>}, {pipeline_mode = #tpu.pipeline_mode<synchronous>, transform_indices = @transform_10, window_bounds = array<i64: 1, 128>}, {pipeline_mode = #tpu.pipeline_mode<synchronous>, transform_indices = @transform_11, window_bounds = array<i64: 128, 128>}, {pipeline_mode = #tpu.pipeline_mode<synchronous>, transform_indices = @transform_12, window_bounds = array<i64: 1, 128>}, {transform_indices = @transform_13, window_bounds = array<i64: 16, 128>}]} {
    %c0 = arith.constant 0 : index
    %c0_0 = arith.constant 0 : index
    %0 = vector.load %arg1[%c0, %c0_0] : memref<16x128xbf16, #tpu.memory_space<vmem>>, vector<16x128xbf16>
    %c0_1 = arith.constant 0 : index
    %c0_2 = arith.constant 0 : index
    %1 = vector.load %arg2[%c0_1, %c0_2] : memref<128x128xbf16, #tpu.memory_space<vmem>>, vector<128x128xbf16>
    %cst = arith.constant dense<0.000000e+00> : vector<16x128xf32>
    %2 = tpu.matmul %0, %1, %cst {dimension_numbers = #tpu.dot_dimension_numbers<[1], [0], [0], [1], [0, 0, 1, 1], [], []>} : vector<16x128xbf16>, vector<128x128xbf16>, vector<16x128xf32> -> vector<16x128xf32>
    %c0_3 = arith.constant 0 : index
    %c0_4 = arith.constant 0 : index
    %3 = vector.load %arg3[%c0_3, %c0_4] : memref<1x128xf32, #tpu.memory_space<vmem>>, vector<1x128xf32>
    %4 = vector.broadcast %3 : vector<1x128xf32> to vector<16x128xf32>
    %5 = arith.addf %2, %4 : vector<16x128xf32>
    %6 = arith.truncf %5 : vector<16x128xf32> to vector<16x128xbf16>
    %c0_5 = arith.constant 0 : index
    %c0_6 = arith.constant 0 : index
    %7 = vector.load %arg4[%c0_5, %c0_6] : memref<128x128xbf16, #tpu.memory_space<vmem>>, vector<128x128xbf16>
    %cst_7 = arith.constant dense<0.000000e+00> : vector<16x128xf32>
    %8 = tpu.matmul %6, %7, %cst_7 {dimension_numbers = #tpu.dot_dimension_numbers<[1], [0], [0], [1], [0, 0, 1, 1], [], []>} : vector<16x128xbf16>, vector<128x128xbf16>, vector<16x128xf32> -> vector<16x128xf32>
    %c0_8 = arith.constant 0 : index
    %c0_9 = arith.constant 0 : index
    %9 = vector.load %arg5[%c0_8, %c0_9] : memref<1x128xf32, #tpu.memory_space<vmem>>, vector<1x128xf32>
    %10 = vector.broadcast %9 : vector<1x128xf32> to vector<16x128xf32>
    %11 = arith.addf %8, %10 : vector<16x128xf32>
    %cst_10 = arith.constant 0.000000e+00 : f32
    %12 = vector.broadcast %cst_10 : f32 to vector<16x128xf32>
    %13 = arith.maximumf %11, %12 : vector<16x128xf32>
    %14 = arith.truncf %13 : vector<16x128xf32> to vector<16x128xbf16>
    %c0_11 = arith.constant 0 : index
    %c0_12 = arith.constant 0 : index
    %15 = vector.load %arg6[%c0_11, %c0_12] : memref<128x128xbf16, #tpu.memory_space<vmem>>, vector<128x128xbf16>
    %cst_13 = arith.constant dense<0.000000e+00> : vector<16x128xf32>
    %16 = tpu.matmul %14, %15, %cst_13 {dimension_numbers = #tpu.dot_dimension_numbers<[1], [0], [0], [1], [0, 0, 1, 1], [], []>} : vector<16x128xbf16>, vector<128x128xbf16>, vector<16x128xf32> -> vector<16x128xf32>
    %c0_14 = arith.constant 0 : index
    %c0_15 = arith.constant 0 : index
    %17 = vector.load %arg7[%c0_14, %c0_15] : memref<1x128xf32, #tpu.memory_space<vmem>>, vector<1x128xf32>
    %18 = vector.broadcast %17 : vector<1x128xf32> to vector<16x128xf32>
    %19 = arith.addf %16, %18 : vector<16x128xf32>
    %20 = arith.truncf %19 : vector<16x128xf32> to vector<16x128xbf16>
    %c0_16 = arith.constant 0 : index
    %c0_17 = arith.constant 0 : index
    %21 = vector.load %arg8[%c0_16, %c0_17] : memref<128x128xbf16, #tpu.memory_space<vmem>>, vector<128x128xbf16>
    %cst_18 = arith.constant dense<0.000000e+00> : vector<16x128xf32>
    %22 = tpu.matmul %20, %21, %cst_18 {dimension_numbers = #tpu.dot_dimension_numbers<[1], [0], [0], [1], [0, 0, 1, 1], [], []>} : vector<16x128xbf16>, vector<128x128xbf16>, vector<16x128xf32> -> vector<16x128xf32>
    %c0_19 = arith.constant 0 : index
    %c0_20 = arith.constant 0 : index
    %23 = vector.load %arg9[%c0_19, %c0_20] : memref<1x128xf32, #tpu.memory_space<vmem>>, vector<1x128xf32>
    %24 = vector.broadcast %23 : vector<1x128xf32> to vector<16x128xf32>
    %25 = arith.addf %22, %24 : vector<16x128xf32>
    %26 = arith.truncf %25 : vector<16x128xf32> to vector<16x128xbf16>
    %c0_21 = arith.constant 0 : index
    %c0_22 = arith.constant 0 : index
    %27 = vector.load %arg10[%c0_21, %c0_22] : memref<128x128xbf16, #tpu.memory_space<vmem>>, vector<128x128xbf16>
    %cst_23 = arith.constant dense<0.000000e+00> : vector<16x128xf32>
    %28 = tpu.matmul %26, %27, %cst_23 {dimension_numbers = #tpu.dot_dimension_numbers<[1], [0], [0], [1], [0, 0, 1, 1], [], []>} : vector<16x128xbf16>, vector<128x128xbf16>, vector<16x128xf32> -> vector<16x128xf32>
    %c0_24 = arith.constant 0 : index
    %c0_25 = arith.constant 0 : index
    %29 = vector.load %arg11[%c0_24, %c0_25] : memref<1x128xf32, #tpu.memory_space<vmem>>, vector<1x128xf32>
    %30 = vector.broadcast %29 : vector<1x128xf32> to vector<16x128xf32>
    %31 = arith.addf %28, %30 : vector<16x128xf32>
    %cst_26 = arith.constant 0.000000e+00 : f32
    %32 = vector.broadcast %cst_26 : f32 to vector<16x128xf32>
    %33 = arith.maximumf %31, %32 : vector<16x128xf32>
    %34 = arith.truncf %33 : vector<16x128xf32> to vector<16x128xbf16>
    %c0_27 = arith.constant 0 : index
    %c0_28 = arith.constant 0 : index
    %35 = vector.load %arg12[%c0_27, %c0_28] : memref<128x128xbf16, #tpu.memory_space<vmem>>, vector<128x128xbf16>
    %cst_29 = arith.constant dense<0.000000e+00> : vector<16x128xf32>
    %36 = tpu.matmul %34, %35, %cst_29 {dimension_numbers = #tpu.dot_dimension_numbers<[1], [0], [0], [1], [0, 0, 1, 1], [], []>} : vector<16x128xbf16>, vector<128x128xbf16>, vector<16x128xf32> -> vector<16x128xf32>
    %c0_30 = arith.constant 0 : index
    %c0_31 = arith.constant 0 : index
    %37 = vector.load %arg13[%c0_30, %c0_31] : memref<1x128xf32, #tpu.memory_space<vmem>>, vector<1x128xf32>
    %38 = vector.broadcast %37 : vector<1x128xf32> to vector<16x128xf32>
    %39 = arith.addf %36, %38 : vector<16x128xf32>
    %cst_32 = arith.constant 0.000000e+00 : f32
    %40 = vector.broadcast %cst_32 : f32 to vector<16x128xf32>
    %41 = arith.subf %40, %39 : vector<16x128xf32>
    %42 = math.exp %41 : vector<16x128xf32>
    %cst_33 = arith.constant 1.000000e+00 : f32
    %43 = vector.broadcast %cst_33 : f32 to vector<16x128xf32>
    %44 = arith.addf %43, %42 : vector<16x128xf32>
    %45 = tpu.reciprocal %44 {approx = true} : vector<16x128xf32> -> vector<16x128xf32>
    %c0_34 = arith.constant 0 : index
    %c0_35 = arith.constant 0 : index
    %46 = vector.load %arg14[%c0_34, %c0_35] : memref<16x128xf32, #tpu.memory_space<vmem>>, vector<16x128xf32>
    tpu.vector_store %arg14[%c0_34, %c0_35], %45 {strides = array<i32>} : memref<16x128xf32, #tpu.memory_space<vmem>>, vector<16x128xf32>,
    return
  }
  func.func @transform_0(%arg0: i32) -> (i32, i32) {
    %c0_i32 = arith.constant 0 : i32
    %c0_i32_0 = arith.constant 0 : i32
    return %arg0, %c0_i32 : i32, i32
  }
  func.func @transform_1(%arg0: i32) -> (i32, i32) {
    %c0_i32 = arith.constant 0 : i32
    %c0_i32_0 = arith.constant 0 : i32
    %c0_i32_1 = arith.constant 0 : i32
    return %c0_i32, %c0_i32_0 : i32, i32
  }
  func.func @transform_2(%arg0: i32) -> (i32, i32) {
    %c0_i32 = arith.constant 0 : i32
    %c0_i32_0 = arith.constant 0 : i32
    %c0_i32_1 = arith.constant 0 : i32
    return %c0_i32, %c0_i32_0 : i32, i32
  }
  func.func @transform_3(%arg0: i32) -> (i32, i32) {
    %c0_i32 = arith.constant 0 : i32
    %c0_i32_0 = arith.constant 0 : i32
    %c0_i32_1 = arith.constant 0 : i32
    return %c0_i32, %c0_i32_0 : i32, i32
  }
  func.func @transform_4(%arg0: i32) -> (i32, i32) {
    %c0_i32 = arith.constant 0 : i32
    %c0_i32_0 = arith.constant 0 : i32
    %c0_i32_1 = arith.constant 0 : i32
    return %c0_i32, %c0_i32_0 : i32, i32
  }
  func.func @transform_5(%arg0: i32) -> (i32, i32) {
    %c0_i32 = arith.constant 0 : i32
    %c0_i32_0 = arith.constant 0 : i32
    %c0_i32_1 = arith.constant 0 : i32
    return %c0_i32, %c0_i32_0 : i32, i32
  }
  func.func @transform_6(%arg0: i32) -> (i32, i32) {
    %c0_i32 = arith.constant 0 : i32
    %c0_i32_0 = arith.constant 0 : i32
    %c0_i32_1 = arith.constant 0 : i32
    return %c0_i32, %c0_i32_0 : i32, i32
  }
  func.func @transform_7(%arg0: i32) -> (i32, i32) {
    %c0_i32 = arith.constant 0 : i32
    %c0_i32_0 = arith.constant 0 : i32
    %c0_i32_1 = arith.constant 0 : i32
    return %c0_i32, %c0_i32_0 : i32, i32
  }
  func.func @transform_8(%arg0: i32) -> (i32, i32) {
    %c0_i32 = arith.constant 0 : i32
    %c0_i32_0 = arith.constant 0 : i32
    %c0_i32_1 = arith.constant 0 : i32
    return %c0_i32, %c0_i32_0 : i32, i32
  }
  func.func @transform_9(%arg0: i32) -> (i32, i32) {
    %c0_i32 = arith.constant 0 : i32
    %c0_i32_0 = arith.constant 0 : i32
    %c0_i32_1 = arith.constant 0 : i32
    return %c0_i32, %c0_i32_0 : i32, i32
  }
  func.func @transform_10(%arg0: i32) -> (i32, i32) {
    %c0_i32 = arith.constant 0 : i32
    %c0_i32_0 = arith.constant 0 : i32
    %c0_i32_1 = arith.constant 0 : i32
    return %c0_i32, %c0_i32_0 : i32, i32
  }
  func.func @transform_11(%arg0: i32) -> (i32, i32) {
    %c0_i32 = arith.constant 0 : i32
    %c0_i32_0 = arith.constant 0 : i32
    %c0_i32_1 = arith.constant 0 : i32
    return %c0_i32, %c0_i32_0 : i32, i32
  }
  func.func @transform_12(%arg0: i32) -> (i32, i32) {
    %c0_i32 = arith.constant 0 : i32
    %c0_i32_0 = arith.constant 0 : i32
    %c0_i32_1 = arith.constant 0 : i32
    return %c0_i32, %c0_i32_0 : i32, i32
  }
  func.func @transform_13(%arg0: i32) -> (i32, i32) {
    %c0_i32 = arith.constant 0 : i32
    %c0_i32_0 = arith.constant 0 : i32
    return %arg0, %c0_i32 : i32, i32
  }
}

module attributes {stable_mosaic.version = 11 : i64} {
  func.func @ff_autoencoder_kernel(%arg0: i32, %arg1: memref<16x128xbf16, #tpu.memory_space<vmem>>, %arg2: memref<128x128xbf16, #tpu.memory_space<vmem>>, %arg3: memref<1x128xf32, #tpu.memory_space<vmem>>, %arg4: memref<128x128xbf16, #tpu.memory_space<vmem>>, %arg5: memref<1x128xf32, #tpu.memory_space<vmem>>, %arg6: memref<128x128xbf16, #tpu.memory_space<vmem>>, %arg7: memref<1x128xf32, #tpu.memory_space<vmem>>, %arg8: memref<128x128xbf16, #tpu.memory_space<vmem>>, %arg9: memref<1x128xf32, #tpu.memory_space<vmem>>, %arg10: memref<128x128xbf16, #tpu.memory_space<vmem>>, %arg11: memref<1x128xf32, #tpu.memory_space<vmem>>, %arg12: memref<128x128xbf16, #tpu.memory_space<vmem>>, %arg13: memref<1x128xf32, #tpu.memory_space<vmem>>, %arg14: memref<16x128xf32, #tpu.memory_space<vmem>>) attributes {dimension_semantics = [#tpu.dimension_semantics<parallel>], iteration_bounds = array<i64: 2>, scalar_prefetch = 0 : i64, scratch_operands = 0 : i64, tpu.core_type = #tpu.core_type<tc>, window_params = [{transform_indices = @transform_0, window_bounds = array<i64: 16, 128>}, {pipeline_mode = #tpu.pipeline_mode<synchronous>, transform_indices = @transform_1, window_bounds = array<i64: 128, 128>}, {pipeline_mode = #tpu.pipeline_mode<synchronous>, transform_indices = @transform_2, window_bounds = array<i64: 1, 128>}, {pipeline_mode = #tpu.pipeline_mode<synchronous>, transform_indices = @transform_3, window_bounds = array<i64: 128, 128>}, {pipeline_mode = #tpu.pipeline_mode<synchronous>, transform_indices = @transform_4, window_bounds = array<i64: 1, 128>}, {pipeline_mode = #tpu.pipeline_mode<synchronous>, transform_indices = @transform_5, window_bounds = array<i64: 128, 128>}, {pipeline_mode = #tpu.pipeline_mode<synchronous>, transform_indices = @transform_6, window_bounds = array<i64: 1, 128>}, {pipeline_mode = #tpu.pipeline_mode<synchronous>, transform_indices = @transform_7, window_bounds = array<i64: 128, 128>}, {pipeline_mode = #tpu.pipeline_mode<synchronous>, transform_indices = @transform_8, window_bounds = array<i64: 1, 128>}, {pipeline_mode = #tpu.pipeline_mode<synchronous>, transform_indices = @transform_9, window_bounds = array<i64: 128, 128>}, {pipeline_mode = #tpu.pipeline_mode<synchronous>, transform_indices = @transform_10, window_bounds = array<i64: 1, 128>}, {pipeline_mode = #tpu.pipeline_mode<synchronous>, transform_indices = @transform_11, window_bounds = array<i64: 128, 128>}, {pipeline_mode = #tpu.pipeline_mode<synchronous>, transform_indices = @transform_12, window_bounds = array<i64: 1, 128>}, {transform_indices = @transform_13, window_bounds = array<i64: 16, 128>}]} {
    %c0 = arith.constant 0 : index
    %c0_0 = arith.constant 0 : index
    %0 = vector.load %arg1[%c0, %c0_0] : memref<16x128xbf16, #tpu.memory_space<vmem>>, vector<16x128xbf16>
    %c0_1 = arith.constant 0 : index
    %c0_2 = arith.constant 0 : index
    %1 = vector.load %arg2[%c0_1, %c0_2] : memref<128x128xbf16, #tpu.memory_space<vmem>>, vector<128x128xbf16>
    %cst = arith.constant dense<0.000000e+00> : vector<16x128xf32>
    %2 = tpu.matmul %0, %1, %cst {dimension_numbers = #tpu.dot_dimension_numbers<[1], [0], [0], [1], [0, 0, 1, 1], [], []>} : vector<16x128xbf16>, vector<128x128xbf16>, vector<16x128xf32> -> vector<16x128xf32>
    %c0_3 = arith.constant 0 : index
    %c0_4 = arith.constant 0 : index
    %3 = vector.load %arg3[%c0_3, %c0_4] : memref<1x128xf32, #tpu.memory_space<vmem>>, vector<1x128xf32>
    %4 = vector.broadcast %3 : vector<1x128xf32> to vector<16x128xf32>
    %5 = arith.addf %2, %4 : vector<16x128xf32>
    %6 = arith.truncf %5 : vector<16x128xf32> to vector<16x128xbf16>
    %c0_5 = arith.constant 0 : index
    %c0_6 = arith.constant 0 : index
    %7 = vector.load %arg4[%c0_5, %c0_6] : memref<128x128xbf16, #tpu.memory_space<vmem>>, vector<128x128xbf16>
    %cst_7 = arith.constant dense<0.000000e+00> : vector<16x128xf32>
    %8 = tpu.matmul %6, %7, %cst_7 {dimension_numbers = #tpu.dot_dimension_numbers<[1], [0], [0], [1], [0, 0, 1, 1], [], []>} : vector<16x128xbf16>, vector<128x128xbf16>, vector<16x128xf32> -> vector<16x128xf32>
    %c0_8 = arith.constant 0 : index
    %c0_9 = arith.constant 0 : index
    %9 = vector.load %arg5[%c0_8, %c0_9] : memref<1x128xf32, #tpu.memory_space<vmem>>, vector<1x128xf32>
    %10 = vector.broadcast %9 : vector<1x128xf32> to vector<16x128xf32>
    %11 = arith.addf %8, %10 : vector<16x128xf32>
    %cst_10 = arith.constant 0.000000e+00 : f32
    %12 = vector.broadcast %cst_10 : f32 to vector<16x128xf32>
    %13 = arith.maximumf %11, %12 : vector<16x128xf32>
    %14 = arith.truncf %13 : vector<16x128xf32> to vector<16x128xbf16>
    %c0_11 = arith.constant 0 : index
    %c0_12 = arith.constant 0 : index
    %15 = vector.load %arg6[%c0_11, %c0_12] : memref<128x128xbf16, #tpu.memory_space<vmem>>, vector<128x128xbf16>
    %cst_13 = arith.constant dense<0.000000e+00> : vector<16x128xf32>
    %16 = tpu.matmul %14, %15, %cst_13 {dimension_numbers = #tpu.dot_dimension_numbers<[1], [0], [0], [1], [0, 0, 1, 1], [], []>} : vector<16x128xbf16>, vector<128x128xbf16>, vector<16x128xf32> -> vector<16x128xf32>
    %c0_14 = arith.constant 0 : index
    %c0_15 = arith.constant 0 : index
    %17 = vector.load %arg7[%c0_14, %c0_15] : memref<1x128xf32, #tpu.memory_space<vmem>>, vector<1x128xf32>
    %18 = vector.broadcast %17 : vector<1x128xf32> to vector<16x128xf32>
    %19 = arith.addf %16, %18 : vector<16x128xf32>
    %20 = arith.truncf %19 : vector<16x128xf32> to vector<16x128xbf16>
    %c0_16 = arith.constant 0 : index
    %c0_17 = arith.constant 0 : index
    %21 = vector.load %arg8[%c0_16, %c0_17] : memref<128x128xbf16, #tpu.memory_space<vmem>>, vector<128x128xbf16>
    %cst_18 = arith.constant dense<0.000000e+00> : vector<16x128xf32>
    %22 = tpu.matmul %20, %21, %cst_18 {dimension_numbers = #tpu.dot_dimension_numbers<[1], [0], [0], [1], [0, 0, 1, 1], [], []>} : vector<16x128xbf16>, vector<128x128xbf16>, vector<16x128xf32> -> vector<16x128xf32>
    %c0_19 = arith.constant 0 : index
    %c0_20 = arith.constant 0 : index
    %23 = vector.load %arg9[%c0_19, %c0_20] : memref<1x128xf32, #tpu.memory_space<vmem>>, vector<1x128xf32>
    %24 = vector.broadcast %23 : vector<1x128xf32> to vector<16x128xf32>
    %25 = arith.addf %22, %24 : vector<16x128xf32>
    %26 = arith.truncf %25 : vector<16x128xf32> to vector<16x128xbf16>
    %c0_21 = arith.constant 0 : index
    %c0_22 = arith.constant 0 : index
    %27 = vector.load %arg10[%c0_21, %c0_22] : memref<128x128xbf16, #tpu.memory_space<vmem>>, vector<128x128xbf16>
    %cst_23 = arith.constant dense<0.000000e+00> : vector<16x128xf32>
    %28 = tpu.matmul %26, %27, %cst_23 {dimension_numbers = #tpu.dot_dimension_numbers<[1], [0], [0], [1], [0, 0, 1, 1], [], []>} : vector<16x128xbf16>, vector<128x128xbf16>, vector<16x128xf32> -> vector<16x128xf32>
    %c0_24 = arith.constant 0 : index
    %c0_25 = arith.constant 0 : index
    %29 = vector.load %arg11[%c0_24, %c0_25] : memref<1x128xf32, #tpu.memory_space<vmem>>, vector<1x128xf32>
    %30 = vector.broadcast %29 : vector<1x128xf32> to vector<16x128xf32>
    %31 = arith.addf %28, %30 : vector<16x128xf32>
    %cst_26 = arith.constant 0.000000e+00 : f32
    %32 = vector.broadcast %cst_26 : f32 to vector<16x128xf32>
    %33 = arith.maximumf %31, %32 : vector<16x128xf32>
    %34 = arith.truncf %33 : vector<16x128xf32> to vector<16x128xbf16>
    %c0_27 = arith.constant 0 : index
    %c0_28 = arith.constant 0 : index
    %35 = vector.load %arg12[%c0_27, %c0_28] : memref<128x128xbf16, #tpu.memory_space<vmem>>, vector<128x128xbf16>
    %cst_29 = arith.constant dense<0.000000e+00> : vector<16x128xf32>
    %36 = tpu.matmul %34, %35, %cst_29 {dimension_numbers = #tpu.dot_dimension_numbers<[1], [0], [0], [1], [0, 0, 1, 1], [], []>} : vector<16x128xbf16>, vector<128x128xbf16>, vector<16x128xf32> -> vector<16x128xf32>
    %c0_30 = arith.constant 0 : index
    %c0_31 = arith.constant 0 : index
    %37 = vector.load %arg13[%c0_30, %c0_31] : memref<1x128xf32, #tpu.memory_space<vmem>>, vector<1x128xf32>
    %38 = vector.broadcast %37 : vector<1x128xf32> to vector<16x128xf32>
    %39 = arith.addf %36, %38 : vector<16x128xf32>
    %cst_32 = arith.constant 0.000000e+00 : f32
    %40 = vector.broadcast %cst_32 : f32 to vector<16x128xf32>
    %41 = arith.subf %40, %39 : vector<16x128xf32>
    %42 = math.exp %41 : vector<16x128xf32>
    %cst_33 = arith.constant 1.000000e+00 : f32
    %43 = vector.broadcast %cst_33 : f32 to vector<16x128xf32>
    %44 = arith.addf %43, %42 : vector<16x128xf32>
    %45 = tpu.reciprocal %44 {approx = true} : vector<16x128xf32> -> vector<16x128xf32>
    %c0_34 = arith.constant 0 : index
    %c0_35 = arith.constant 0 : index
    %46 = vector.load %arg14[%c0_34, %c0_35] : memref<16x128xf32, #tpu.memory_space<vmem>>, vector<16x128xf32>
    tpu.vector_store %arg14[%c0_34, %c0_35], %45 {strides = array<i32>} : memref<16x128xf32, #tpu.memory_space<vmem>>, vector<16x128xf32>,
    return
  }
  func.func @transform_0(%arg0: i32) -> (i32, i32) {
    %c0_i32 = arith.constant 0 : i32
    %c0_i32_0 = arith.constant 0 : i32
    return %arg0, %c0_i32 : i32, i32
  }
  func.func @transform_1(%arg0: i32) -> (i32, i32) {
    %c0_i32 = arith.constant 0 : i32
    %c0_i32_0 = arith.constant 0 : i32
    %c0_i32_1 = arith.constant 0 : i32
    return %c0_i32, %c0_i32_0 : i32, i32
  }
  func.func @transform_2(%arg0: i32) -> (i32, i32) {
    %c0_i32 = arith.constant 0 : i32
    %c0_i32_0 = arith.constant 0 : i32
    %c0_i32_1 = arith.constant 0 : i32
    return %c0_i32, %c0_i32_0 : i32, i32
  }
  func.func @transform_3(%arg0: i32) -> (i32, i32) {
    %c0_i32 = arith.constant 0 : i32
    %c0_i32_0 = arith.constant 0 : i32
    %c0_i32_1 = arith.constant 0 : i32
    return %c0_i32, %c0_i32_0 : i32, i32
  }
  func.func @transform_4(%arg0: i32) -> (i32, i32) {
    %c0_i32 = arith.constant 0 : i32
    %c0_i32_0 = arith.constant 0 : i32
    %c0_i32_1 = arith.constant 0 : i32
    return %c0_i32, %c0_i32_0 : i32, i32
  }
  func.func @transform_5(%arg0: i32) -> (i32, i32) {
    %c0_i32 = arith.constant 0 : i32
    %c0_i32_0 = arith.constant 0 : i32
    %c0_i32_1 = arith.constant 0 : i32
    return %c0_i32, %c0_i32_0 : i32, i32
  }
  func.func @transform_6(%arg0: i32) -> (i32, i32) {
    %c0_i32 = arith.constant 0 : i32
    %c0_i32_0 = arith.constant 0 : i32
    %c0_i32_1 = arith.constant 0 : i32
    return %c0_i32, %c0_i32_0 : i32, i32
  }
  func.func @transform_7(%arg0: i32) -> (i32, i32) {
    %c0_i32 = arith.constant 0 : i32
    %c0_i32_0 = arith.constant 0 : i32
    %c0_i32_1 = arith.constant 0 : i32
    return %c0_i32, %c0_i32_0 : i32, i32
  }
  func.func @transform_8(%arg0: i32) -> (i32, i32) {
    %c0_i32 = arith.constant 0 : i32
    %c0_i32_0 = arith.constant 0 : i32
    %c0_i32_1 = arith.constant 0 : i32
    return %c0_i32, %c0_i32_0 : i32, i32
  }
  func.func @transform_9(%arg0: i32) -> (i32, i32) {
    %c0_i32 = arith.constant 0 : i32
    %c0_i32_0 = arith.constant 0 : i32
    %c0_i32_1 = arith.constant 0 : i32
    return %c0_i32, %c0_i32_0 : i32, i32
  }
  func.func @transform_10(%arg0: i32) -> (i32, i32) {
    %c0_i32 = arith.constant 0 : i32
    %c0_i32_0 = arith.constant 0 : i32
    %c0_i32_1 = arith.constant 0 : i32
    return %c0_i32, %c0_i32_0 : i32, i32
  }
  func.func @transform_11(%arg0: i32) -> (i32, i32) {
    %c0_i32 = arith.constant 0 : i32
    %c0_i32_0 = arith.constant 0 : i32
    %c0_i32_1 = arith.constant 0 : i32
    return %c0_i32, %c0_i32_0 : i32, i32
  }
  func.func @transform_12(%arg0: i32) -> (i32, i32) {
    %c0_i32 = arith.constant 0 : i32
    %c0_i32_0 = arith.constant 0 : i32
    %c0_i32_1 = arith.constant 0 : i32
    return %c0_i32, %c0_i32_0 : i32, i32
  }
  func.func @transform_13(%arg0: i32) -> (i32, i32) {
    %c0_i32 = arith.constant 0 : i32
    %c0_i32_0 = arith.constant 0 : i32
    return %arg0, %c0_i32 : i32, i32
  }
}

</mosaic_0001>

<llo_original>
// kernel: tpu_custom_call.1
$region0: #{tpu_custom_call.1}
  #allocation0 [shape = 'u32[]', space=smem, size = 0x4, offset = 0x4, fixed_abs, tag = 'smem constant byte address 0x4 - core index']
  #allocation1 [shape = 'u32[144,128]{1,0:T(1,128)}', space=vmem, size = 0x12000, scoped, tag = 'internal scratch']
  %s0 = inlined_call_operand.hbm [shape: bf16[32,128], index: 0, kind: input, shape index: {}]
  %s1 = inlined_call_operand.hbm [shape: bf16[128,128], index: 1, kind: input, shape index: {}]
  %s2 = inlined_call_operand.vmem [shape: f32[1,128], index: 2, kind: input, shape index: {}]
  %s3 = inlined_call_operand.hbm [shape: bf16[128,128], index: 3, kind: input, shape index: {}]
  %s4 = inlined_call_operand.vmem [shape: f32[1,128], index: 4, kind: input, shape index: {}]
  %s5 = inlined_call_operand.hbm [shape: bf16[128,128], index: 5, kind: input, shape index: {}]
  %s6 = inlined_call_operand.vmem [shape: f32[1,128], index: 6, kind: input, shape index: {}]
  %s7 = inlined_call_operand.hbm [shape: bf16[128,128], index: 7, kind: input, shape index: {}]
  %s8 = inlined_call_operand.vmem [shape: f32[1,128], index: 8, kind: input, shape index: {}]
  %s9 = inlined_call_operand.hbm [shape: bf16[128,128], index: 9, kind: input, shape index: {}]
  %s10 = inlined_call_operand.vmem [shape: f32[1,128], index: 10, kind: input, shape index: {}]
  %s11 = inlined_call_operand.hbm [shape: bf16[128,128], index: 11, kind: input, shape index: {}]
  %s12 = inlined_call_operand.vmem [shape: f32[1,128], index: 12, kind: input, shape index: {}]
  %s13 = inlined_call_operand.hbm [shape: f32[32,128], index: 13, kind: output, shape index: {}]
  %s14 = sld [smem:[#allocation0]]
  $region113: #{tpu_custom_call.1} parent=0
    _
  %s16 = ssub.s32 1, %s14
  %s17 = scalar_select 0, %s16, %s14
  $region1: #{tpu_custom_call.1} parent=0
    #allocation2 [shape = 'u8[8192]{0}', space=vmem, size = 0x2000, scoped, tag = 'input window, operand 0']
    #allocation3 [shape = 's32[2]{0}', space=sflag, size = 0x8, scoped, tag = 'scoped memory for tpu_custom_call.1']
    #allocation4 [shape = 's32[2]{0}', space=sflag, size = 0x8, scoped, tag = 'scoped memory for tpu_custom_call.1']
    #allocation5 [shape = 'u8[32768]{0}', space=vmem, size = 0x8000, scoped, tag = 'input window, operand 1, single buffered']
    #allocation6 [shape = 's32[1]{0}', space=sflag, size = 0x4, scoped, tag = 'scoped memory for tpu_custom_call.1']
    #allocation7 [shape = 'u8[32768]{0}', space=vmem, size = 0x8000, scoped, tag = 'input window, operand 3, single buffered']
    #allocation8 [shape = 'u8[32768]{0}', space=vmem, size = 0x8000, scoped, tag = 'input window, operand 5, single buffered']
    #allocation9 [shape = 's32[1]{0}', space=sflag, size = 0x4, scoped, tag = 'scoped memory for tpu_custom_call.1']
    #allocation10 [shape = 'u8[32768]{0}', space=vmem, size = 0x8000, scoped, tag = 'input window, operand 7, single buffered']
    #allocation11 [shape = 'u8[32768]{0}', space=vmem, size = 0x8000, scoped, tag = 'input window, operand 9, single buffered']
    #allocation12 [shape = 's32[1]{0}', space=sflag, size = 0x4, scoped, tag = 'scoped memory for tpu_custom_call.1']
    #allocation13 [shape = 'u8[32768]{0}', space=vmem, size = 0x8000, scoped, tag = 'input window, operand 11, single buffered']
    #allocation14 [shape = 'u8[16384]{0}', space=vmem, size = 0x4000, scoped, tag = 'output window, operand 0']
    %18 = vsyncpa [#allocation3], 0
    %s19 = scalar_lea.sflag [#allocation3], 1
    %20 = vsyncpa %s19, 0
    %21 = vsyncpa [#allocation6], 0
    %22 = vsyncpa [#allocation9], 0
    %23 = vsyncpa [#allocation12], 0
    %24 = vsyncpa [#allocation4], 0
    %s25 = scalar_lea.sflag [#allocation4], 1
    %26 = vsyncpa %s25, 0
    loop: start=0, step=1, limit=4
    $region2: #{tpu_custom_call.1} parent=1 // loop_pre_header
      _
    $region3: #{tpu_custom_call.1} parent=1 // loop_header
      %s28 = sphi 0, %s32
      %p29 = scmp.ge.s32.totalorder %s28, 4
      %s38 = sphi 0, %s40
      %s41 = sphi 0, %s38
      %s42 = sphi 0, %s41
      %s58 = sphi 0, %s42
      %s62 = sphi 0, %s62
      %s64 = sphi 0, %s62
      %s65 = sphi 0, %s64
      %s79 = sphi 0, %s65
      %s83 = sphi 0, %s83
      %s85 = sphi 0, %s83
      %s86 = sphi 0, %s85
      %s100 = sphi 0, %s86
      %s104 = sphi 0, %s104
      %s106 = sphi 0, %s104
      %s107 = sphi 0, %s106
      %s121 = sphi 0, %s107
      %s125 = sphi 0, %s125
      %s127 = sphi 0, %s125
      %s128 = sphi 0, %s127
      %s142 = sphi 0, %s128
      %s146 = sphi 0, %s146
      %s148 = sphi 0, %s146
      %s149 = sphi 0, %s148
      %s163 = sphi 0, %s149
      %s167 = sphi 0, %s167
      %s169 = sphi 0, %s167
      %s170 = sphi 0, %s169
      %s184 = sphi 0, %s170
      %s188 = sphi 0, %s188
      %s190 = sphi 0, %s188
      %s191 = sphi 0, %s190
      %s205 = sphi 0, %s191
      %s209 = sphi 0, %s209
      %s211 = sphi 0, %s209
      %s212 = sphi 0, %s211
      %s226 = sphi 0, %s212
      %s230 = sphi 0, %s230
      %s232 = sphi 0, %s230
      %s233 = sphi 0, %s232
      %s247 = sphi 0, %s233
      %s251 = sphi 0, %s251
      %s253 = sphi 0, %s251
      %s254 = sphi 0, %s253
      %s268 = sphi 0, %s254
      %s272 = sphi 0, %s272
      %s274 = sphi 0, %s272
      %s275 = sphi 0, %s274
      %s289 = sphi 0, %s275
      %s293 = sphi 0, %s293
      %s295 = sphi 0, %s293
      %s296 = sphi 0, %s295
      %s310 = sphi 0, %s296
      %s316 = sphi 0, %s318
      %s319 = sphi 0, %s316
      %s320 = sphi 0, %s319
      %s336 = sphi 0, %s320
    $region4: #{tpu_custom_call.1} parent=1 // loop_header_branch
      %31 = sbr.rel (%p29) target = $region8
    $region5: #{tpu_custom_call.1} parent=1 // loop_body
      %s33 = ssub.s32 %s28, 1
      %s34 = ssub.s32 %s28, 2
      %s35 = sadd.s32 %s28, 1
      %s36 = ssub.s32 %s28, %s35
      %p37 = scmp.eq.s32.totalorder %s36, 0
      %s39 = sadd.s32 %s38, 1
      %s40 = scalar_select %p37, %s38, %s39
      %p43 = pneg %p37
      %p44 = scmp.eq.s32.totalorder %s28, 1
      %p45 = por %p43, %p44
      %p46 = scmp.ne.s32.totalorder %s38, %s41
      %p47 = scmp.eq.s32.totalorder %s28, 0
      %p48 = por %p46, %p47
      %p49 = scmp.ne.s32.totalorder %s38, %s41
      %p50 = scmp.eq.s32.totalorder %s33, 1
      %p51 = por %p49, %p50
      %p52 = scmp.ne.s32.totalorder %s41, %s42
      %p53 = scmp.eq.s32.totalorder %s33, 0
      %p54 = por %p52, %p53
      %p55 = scmp.ne.s32.totalorder %s41, %s42
      %p56 = scmp.eq.s32.totalorder %s34, 1
      %p57 = por %p55, %p56
      %p59 = scmp.ne.s32.totalorder %s42, %s58
      %p60 = scmp.eq.s32.totalorder %s34, 0
      %p61 = por %p59, %p60
      %s63 = sadd.s32 %s62, 1
      %p66 = scmp.eq.s32.totalorder %s28, 1
      %p67 = scmp.ne.s32.totalorder %s62, %s64
      %p68 = scmp.eq.s32.totalorder %s28, 0
      %p69 = por %p67, %p68
      %p70 = scmp.ne.s32.totalorder %s62, %s64
      %p71 = scmp.eq.s32.totalorder %s33, 1
      %p72 = por %p70, %p71
      %p73 = scmp.ne.s32.totalorder %s64, %s65
      %p74 = scmp.eq.s32.totalorder %s33, 0
      %p75 = por %p73, %p74
      %p76 = scmp.ne.s32.totalorder %s64, %s65
      %p77 = scmp.eq.s32.totalorder %s34, 1
      %p78 = por %p76, %p77
      %p80 = scmp.ne.s32.totalorder %s65, %s79
      %p81 = scmp.eq.s32.totalorder %s34, 0
      %p82 = por %p80, %p81
      %s84 = sadd.s32 %s83, 1
      %p87 = scmp.eq.s32.totalorder %s28, 1
      %p88 = scmp.ne.s32.totalorder %s83, %s85
      %p89 = scmp.eq.s32.totalorder %s28, 0
      %p90 = por %p88, %p89
      %p91 = scmp.ne.s32.totalorder %s83, %s85
      %p92 = scmp.eq.s32.totalorder %s33, 1
      %p93 = por %p91, %p92
      %p94 = scmp.ne.s32.totalorder %s85, %s86
      %p95 = scmp.eq.s32.totalorder %s33, 0
      %p96 = por %p94, %p95
      %p97 = scmp.ne.s32.totalorder %s85, %s86
      %p98 = scmp.eq.s32.totalorder %s34, 1
      %p99 = por %p97, %p98
      %p101 = scmp.ne.s32.totalorder %s86, %s100
      %p102 = scmp.eq.s32.totalorder %s34, 0
      %p103 = por %p101, %p102
      %s105 = sadd.s32 %s104, 1
      %p108 = scmp.eq.s32.totalorder %s28, 1
      %p109 = scmp.ne.s32.totalorder %s104, %s106
      %p110 = scmp.eq.s32.totalorder %s28, 0
      %p111 = por %p109, %p110
      %p112 = scmp.ne.s32.totalorder %s104, %s106
      %p113 = scmp.eq.s32.totalorder %s33, 1
      %p114 = por %p112, %p113
      %p115 = scmp.ne.s32.totalorder %s106, %s107
      %p116 = scmp.eq.s32.totalorder %s33, 0
      %p117 = por %p115, %p116
      %p118 = scmp.ne.s32.totalorder %s106, %s107
      %p119 = scmp.eq.s32.totalorder %s34, 1
      %p120 = por %p118, %p119
      %p122 = scmp.ne.s32.totalorder %s107, %s121
      %p123 = scmp.eq.s32.totalorder %s34, 0
      %p124 = por %p122, %p123
      %s126 = sadd.s32 %s125, 1
      %p129 = scmp.eq.s32.totalorder %s28, 1
      %p130 = scmp.ne.s32.totalorder %s125, %s127
      %p131 = scmp.eq.s32.totalorder %s28, 0
      %p132 = por %p130, %p131
      %p133 = scmp.ne.s32.totalorder %s125, %s127
      %p134 = scmp.eq.s32.totalorder %s33, 1
      %p135 = por %p133, %p134
      %p136 = scmp.ne.s32.totalorder %s127, %s128
      %p137 = scmp.eq.s32.totalorder %s33, 0
      %p138 = por %p136, %p137
      %p139 = scmp.ne.s32.totalorder %s127, %s128
      %p140 = scmp.eq.s32.totalorder %s34, 1
      %p141 = por %p139, %p140
      %p143 = scmp.ne.s32.totalorder %s128, %s142
      %p144 = scmp.eq.s32.totalorder %s34, 0
      %p145 = por %p143, %p144
      %s147 = sadd.s32 %s146, 1
      %p150 = scmp.eq.s32.totalorder %s28, 1
      %p151 = scmp.ne.s32.totalorder %s146, %s148
      %p152 = scmp.eq.s32.totalorder %s28, 0
      %p153 = por %p151, %p152
      %p154 = scmp.ne.s32.totalorder %s146, %s148
      %p155 = scmp.eq.s32.totalorder %s33, 1
      %p156 = por %p154, %p155
      %p157 = scmp.ne.s32.totalorder %s148, %s149
      %p158 = scmp.eq.s32.totalorder %s33, 0
      %p159 = por %p157, %p158
      %p160 = scmp.ne.s32.totalorder %s148, %s149
      %p161 = scmp.eq.s32.totalorder %s34, 1
      %p162 = por %p160, %p161
      %p164 = scmp.ne.s32.totalorder %s149, %s163
      %p165 = scmp.eq.s32.totalorder %s34, 0
      %p166 = por %p164, %p165
      %s168 = sadd.s32 %s167, 1
      %p171 = scmp.eq.s32.totalorder %s28, 1
      %p172 = scmp.ne.s32.totalorder %s167, %s169
      %p173 = scmp.eq.s32.totalorder %s28, 0
      %p174 = por %p172, %p173
      %p175 = scmp.ne.s32.totalorder %s167, %s169
      %p176 = scmp.eq.s32.totalorder %s33, 1
      %p177 = por %p175, %p176
      %p178 = scmp.ne.s32.totalorder %s169, %s170
      %p179 = scmp.eq.s32.totalorder %s33, 0
      %p180 = por %p178, %p179
      %p181 = scmp.ne.s32.totalorder %s169, %s170
      %p182 = scmp.eq.s32.totalorder %s34, 1
      %p183 = por %p181, %p182
      %p185 = scmp.ne.s32.totalorder %s170, %s184
      %p186 = scmp.eq.s32.totalorder %s34, 0
      %p187 = por %p185, %p186
      %s189 = sadd.s32 %s188, 1
      %p192 = scmp.eq.s32.totalorder %s28, 1
      %p193 = scmp.ne.s32.totalorder %s188, %s190
      %p194 = scmp.eq.s32.totalorder %s28, 0
      %p195 = por %p193, %p194
      %p196 = scmp.ne.s32.totalorder %s188, %s190
      %p197 = scmp.eq.s32.totalorder %s33, 1
      %p198 = por %p196, %p197
      %p199 = scmp.ne.s32.totalorder %s190, %s191
      %p200 = scmp.eq.s32.totalorder %s33, 0
      %p201 = por %p199, %p200
      %p202 = scmp.ne.s32.totalorder %s190, %s191
      %p203 = scmp.eq.s32.totalorder %s34, 1
      %p204 = por %p202, %p203
      %p206 = scmp.ne.s32.totalorder %s191, %s205
      %p207 = scmp.eq.s32.totalorder %s34, 0
      %p208 = por %p206, %p207
      %s210 = sadd.s32 %s209, 1
      %p213 = scmp.eq.s32.totalorder %s28, 1
      %p214 = scmp.ne.s32.totalorder %s209, %s211
      %p215 = scmp.eq.s32.totalorder %s28, 0
      %p216 = por %p214, %p215
      %p217 = scmp.ne.s32.totalorder %s209, %s211
      %p218 = scmp.eq.s32.totalorder %s33, 1
      %p219 = por %p217, %p218
      %p220 = scmp.ne.s32.totalorder %s211, %s212
      %p221 = scmp.eq.s32.totalorder %s33, 0
      %p222 = por %p220, %p221
      %p223 = scmp.ne.s32.totalorder %s211, %s212
      %p224 = scmp.eq.s32.totalorder %s34, 1
      %p225 = por %p223, %p224
      %p227 = scmp.ne.s32.totalorder %s212, %s226
      %p228 = scmp.eq.s32.totalorder %s34, 0
      %p229 = por %p227, %p228
      %s231 = sadd.s32 %s230, 1
      %p234 = scmp.eq.s32.totalorder %s28, 1
      %p235 = scmp.ne.s32.totalorder %s230, %s232
      %p236 = scmp.eq.s32.totalorder %s28, 0
      %p237 = por %p235, %p236
      %p238 = scmp.ne.s32.totalorder %s230, %s232
      %p239 = scmp.eq.s32.totalorder %s33, 1
      %p240 = por %p238, %p239
      %p241 = scmp.ne.s32.totalorder %s232, %s233
      %p242 = scmp.eq.s32.totalorder %s33, 0
      %p243 = por %p241, %p242
      %p244 = scmp.ne.s32.totalorder %s232, %s233
      %p245 = scmp.eq.s32.totalorder %s34, 1
      %p246 = por %p244, %p245
      %p248 = scmp.ne.s32.totalorder %s233, %s247
      %p249 = scmp.eq.s32.totalorder %s34, 0
      %p250 = por %p248, %p249
      %s252 = sadd.s32 %s251, 1
      %p255 = scmp.eq.s32.totalorder %s28, 1
      %p256 = scmp.ne.s32.totalorder %s251, %s253
      %p257 = scmp.eq.s32.totalorder %s28, 0
      %p258 = por %p256, %p257
      %p259 = scmp.ne.s32.totalorder %s251, %s253
      %p260 = scmp.eq.s32.totalorder %s33, 1
      %p261 = por %p259, %p260
      %p262 = scmp.ne.s32.totalorder %s253, %s254
      %p263 = scmp.eq.s32.totalorder %s33, 0
      %p264 = por %p262, %p263
      %p265 = scmp.ne.s32.totalorder %s253, %s254
      %p266 = scmp.eq.s32.totalorder %s34, 1
      %p267 = por %p265, %p266
      %p269 = scmp.ne.s32.totalorder %s254, %s268
      %p270 = scmp.eq.s32.totalorder %s34, 0
      %p271 = por %p269, %p270
      %s273 = sadd.s32 %s272, 1
      %p276 = scmp.eq.s32.totalorder %s28, 1
      %p277 = scmp.ne.s32.totalorder %s272, %s274
      %p278 = scmp.eq.s32.totalorder %s28, 0
      %p279 = por %p277, %p278
      %p280 = scmp.ne.s32.totalorder %s272, %s274
      %p281 = scmp.eq.s32.totalorder %s33, 1
      %p282 = por %p280, %p281
      %p283 = scmp.ne.s32.totalorder %s274, %s275
      %p284 = scmp.eq.s32.totalorder %s33, 0
      %p285 = por %p283, %p284
      %p286 = scmp.ne.s32.totalorder %s274, %s275
      %p287 = scmp.eq.s32.totalorder %s34, 1
      %p288 = por %p286, %p287
      %p290 = scmp.ne.s32.totalorder %s275, %s289
      %p291 = scmp.eq.s32.totalorder %s34, 0
      %p292 = por %p290, %p291
      %s294 = sadd.s32 %s293, 1
      %p297 = scmp.eq.s32.totalorder %s28, 1
      %p298 = scmp.ne.s32.totalorder %s293, %s295
      %p299 = scmp.eq.s32.totalorder %s28, 0
      %p300 = por %p298, %p299
      %p301 = scmp.ne.s32.totalorder %s293, %s295
      %p302 = scmp.eq.s32.totalorder %s33, 1
      %p303 = por %p301, %p302
      %p304 = scmp.ne.s32.totalorder %s295, %s296
      %p305 = scmp.eq.s32.totalorder %s33, 0
      %p306 = por %p304, %p305
      %p307 = scmp.ne.s32.totalorder %s295, %s296
      %p308 = scmp.eq.s32.totalorder %s34, 1
      %p309 = por %p307, %p308
      %p311 = scmp.ne.s32.totalorder %s296, %s310
      %p312 = scmp.eq.s32.totalorder %s34, 0
      %p313 = por %p311, %p312
      %s314 = ssub.s32 %s28, %s35
      %p315 = scmp.eq.s32.totalorder %s314, 0
      %s317 = sadd.s32 %s316, 1
      %s318 = scalar_select %p315, %s316, %s317
      %p321 = pneg %p315
      %p322 = scmp.eq.s32.totalorder %s28, 1
      %p323 = por %p321, %p322
      %p324 = scmp.ne.s32.totalorder %s316, %s319
      %p325 = scmp.eq.s32.totalorder %s28, 0
      %p326 = por %p324, %p325
      %p327 = scmp.ne.s32.totalorder %s316, %s319
      %p328 = scmp.eq.s32.totalorder %s33, 1
      %p329 = por %p327, %p328
      %p330 = scmp.ne.s32.totalorder %s319, %s320
      %p331 = scmp.eq.s32.totalorder %s33, 0
      %p332 = por %p330, %p331
      %p333 = scmp.ne.s32.totalorder %s319, %s320
      %p334 = scmp.eq.s32.totalorder %s34, 1
      %p335 = por %p333, %p334
      %p337 = scmp.ne.s32.totalorder %s320, %s336
      %p338 = scmp.eq.s32.totalorder %s34, 0
      %p339 = por %p337, %p338
      %p340 = scmp.le.s32.totalorder 1, %s28
      %p341 = scmp.lt.s32.totalorder %s28, 3
      %p342 = pnand %p340, %p341
      %p343 = pneg %p342
      // Predicated region
      $region9: #{tpu_custom_call.1} parent=5 // pred_check
        _
      $region10: #{tpu_custom_call.1} parent=5 // pred_check_branch
        %345 = sbr.rel (%p342) target = $region12
      $region11: #{tpu_custom_call.1} parent=5 // pred_region
        %s346 = ssub.s32 %s28, 1
        // Predicated region
        $region13: #{tpu_custom_call.1} parent=11 // pred_check
          %p347 = pneg %p75
        $region14: #{tpu_custom_call.1} parent=11 // pred_check_branch
          %349 = sbr.rel (%p347) target = $region16
        $region15: #{tpu_custom_call.1} parent=11 // pred_region
          %s351 = ssub.s32 1024, 1024
          %352 = vsyncadd [#allocation6], %s351
          %s353 = sshll.u32 [#allocation5], 4
          %s354 = int_to_ptr.vmem [resolvable:$true] %s353
          %359 = dma.hbm_to_vmem [thread:$0]  %s1, 1024, %s354, [#allocation6], 64, 64, 4
        $region16: #{tpu_custom_call.1} parent=11 // pred_fallthru
          _
        // Predicated region
        $region17: #{tpu_custom_call.1} parent=11 // pred_check
          %p360 = pneg %p96
        $region18: #{tpu_custom_call.1} parent=11 // pred_check_branch
          %362 = sbr.rel (%p360) target = $region20
        $region19: #{tpu_custom_call.1} parent=11 // pred_region
          _
        $region20: #{tpu_custom_call.1} parent=11 // pred_fallthru
          _
        // Predicated region
        $region21: #{tpu_custom_call.1} parent=11 // pred_check
          %p363 = pneg %p117
        $region22: #{tpu_custom_call.1} parent=11 // pred_check_branch
          %365 = sbr.rel (%p363) target = $region24
        $region23: #{tpu_custom_call.1} parent=11 // pred_region
          %s367 = ssub.s32 1024, 1024
          %368 = vsyncadd [#allocation6], %s367
          %s369 = sshll.u32 [#allocation7], 4
          %s370 = int_to_ptr.vmem [resolvable:$true] %s369
          %375 = dma.hbm_to_vmem [thread:$0]  %s3, 1024, %s370, [#allocation6], 64, 64, 4
        $region24: #{tpu_custom_call.1} parent=11 // pred_fallthru
          _
        // Predicated region
        $region25: #{tpu_custom_call.1} parent=11 // pred_check
          %p376 = pneg %p138
        $region26: #{tpu_custom_call.1} parent=11 // pred_check_branch
          %378 = sbr.rel (%p376) target = $region28
        $region27: #{tpu_custom_call.1} parent=11 // pred_region
          _
        $region28: #{tpu_custom_call.1} parent=11 // pred_fallthru
          _
        // Predicated region
        $region29: #{tpu_custom_call.1} parent=11 // pred_check
          %p379 = pneg %p159
        $region30: #{tpu_custom_call.1} parent=11 // pred_check_branch
          %381 = sbr.rel (%p379) target = $region32
        $region31: #{tpu_custom_call.1} parent=11 // pred_region
          %s383 = ssub.s32 1024, 1024
          %384 = vsyncadd [#allocation9], %s383
          %s385 = sshll.u32 [#allocation8], 4
          %s386 = int_to_ptr.vmem [resolvable:$true] %s385
          %391 = dma.hbm_to_vmem [thread:$0]  %s5, 1024, %s386, [#allocation9], 64, 64, 4
        $region32: #{tpu_custom_call.1} parent=11 // pred_fallthru
          _
        // Predicated region
        $region33: #{tpu_custom_call.1} parent=11 // pred_check
          %p392 = pneg %p180
        $region34: #{tpu_custom_call.1} parent=11 // pred_check_branch
          %394 = sbr.rel (%p392) target = $region36
        $region35: #{tpu_custom_call.1} parent=11 // pred_region
          _
        $region36: #{tpu_custom_call.1} parent=11 // pred_fallthru
          _
        // Predicated region
        $region37: #{tpu_custom_call.1} parent=11 // pred_check
          %p395 = pneg %p201
        $region38: #{tpu_custom_call.1} parent=11 // pred_check_branch
          %397 = sbr.rel (%p395) target = $region40
        $region39: #{tpu_custom_call.1} parent=11 // pred_region
          %s399 = ssub.s32 1024, 1024
          %400 = vsyncadd [#allocation9], %s399
          %s401 = sshll.u32 [#allocation10], 4
          %s402 = int_to_ptr.vmem [resolvable:$true] %s401
          %407 = dma.hbm_to_vmem [thread:$0]  %s7, 1024, %s402, [#allocation9], 64, 64, 4
        $region40: #{tpu_custom_call.1} parent=11 // pred_fallthru
          _
        // Predicated region
        $region41: #{tpu_custom_call.1} parent=11 // pred_check
          %p408 = pneg %p222
        $region42: #{tpu_custom_call.1} parent=11 // pred_check_branch
          %410 = sbr.rel (%p408) target = $region44
        $region43: #{tpu_custom_call.1} parent=11 // pred_region
          _
        $region44: #{tpu_custom_call.1} parent=11 // pred_fallthru
          _
        // Predicated region
        $region45: #{tpu_custom_call.1} parent=11 // pred_check
          %p411 = pneg %p243
        $region46: #{tpu_custom_call.1} parent=11 // pred_check_branch
          %413 = sbr.rel (%p411) target = $region48
        $region47: #{tpu_custom_call.1} parent=11 // pred_region
          %s415 = ssub.s32 1024, 1024
          %416 = vsyncadd [#allocation12], %s415
          %s417 = sshll.u32 [#allocation11], 4
          %s418 = int_to_ptr.vmem [resolvable:$true] %s417
          %423 = dma.hbm_to_vmem [thread:$0]  %s9, 1024, %s418, [#allocation12], 64, 64, 4
        $region48: #{tpu_custom_call.1} parent=11 // pred_fallthru
          _
        // Predicated region
        $region49: #{tpu_custom_call.1} parent=11 // pred_check
          %p424 = pneg %p264
        $region50: #{tpu_custom_call.1} parent=11 // pred_check_branch
          %426 = sbr.rel (%p424) target = $region52
        $region51: #{tpu_custom_call.1} parent=11 // pred_region
          _
        $region52: #{tpu_custom_call.1} parent=11 // pred_fallthru
          _
        // Predicated region
        $region53: #{tpu_custom_call.1} parent=11 // pred_check
          %p427 = pneg %p285
        $region54: #{tpu_custom_call.1} parent=11 // pred_check_branch
          %429 = sbr.rel (%p427) target = $region56
        $region55: #{tpu_custom_call.1} parent=11 // pred_region
          %s431 = ssub.s32 1024, 1024
          %432 = vsyncadd [#allocation12], %s431
          %s433 = sshll.u32 [#allocation13], 4
          %s434 = int_to_ptr.vmem [resolvable:$true] %s433
          %439 = dma.hbm_to_vmem [thread:$0]  %s11, 1024, %s434, [#allocation12], 64, 64, 4
        $region56: #{tpu_custom_call.1} parent=11 // pred_fallthru
          _
        // Predicated region
        $region57: #{tpu_custom_call.1} parent=11 // pred_check
          %p440 = pneg %p306
        $region58: #{tpu_custom_call.1} parent=11 // pred_check_branch
          %442 = sbr.rel (%p440) target = $region60
        $region59: #{tpu_custom_call.1} parent=11 // pred_region
          _
        $region60: #{tpu_custom_call.1} parent=11 // pred_fallthru
          _
      $region12: #{tpu_custom_call.1} parent=5 // pred_fallthru
        _
      %p443 = scmp.lt.s32.totalorder %s28, 2
      // Predicated region
      $region61: #{tpu_custom_call.1} parent=5 // pred_check
        %p444 = pneg %p443
      $region62: #{tpu_custom_call.1} parent=5 // pred_check_branch
        %446 = sbr.rel (%p444) target = $region64
      $region63: #{tpu_custom_call.1} parent=5 // pred_region
        // Predicated region
        $region65: #{tpu_custom_call.1} parent=63 // pred_check
          %p447 = pneg %p48
        $region66: #{tpu_custom_call.1} parent=63 // pred_check_branch
          %449 = sbr.rel (%p447) target = $region68
        $region67: #{tpu_custom_call.1} parent=63 // pred_region
          %s450 = sand.u32 %s38, 1
          %s451 = scalar_lea.sflag [#allocation3], %s450
          %s452 = sand.u32 %s38, 1
          %s453 = smul.addr %s452, 8
          %s454 = scalar_lea.vmem [#allocation2], %s453
          %s455 = smul.u32 2, %s28
          %s457 = ssub.s32 128, 128
          %458 = vsyncadd %s451, %s457
          %s459 = smul.addr %s455, 64
          %s460 = scalar_lea.hbm %s0, %s459
          %s461 = sshll.u32 %s454, 4
          %s462 = int_to_ptr.vmem [resolvable:$true] %s461
          %467 = dma.hbm_to_vmem [thread:$0]  %s460, 128, %s462, %s451, 64, 64, 4
        $region68: #{tpu_custom_call.1} parent=63 // pred_fallthru
          _
      $region64: #{tpu_custom_call.1} parent=5 // pred_fallthru
        _
      %p468 = scmp.le.s32.totalorder 1, %s28
      %p469 = scmp.lt.s32.totalorder %s28, 3
      %p470 = pnand %p468, %p469
      %p471 = pneg %p470
      // Predicated region
      $region69: #{tpu_custom_call.1} parent=5 // pred_check
        _
      $region70: #{tpu_custom_call.1} parent=5 // pred_check_branch
        %473 = sbr.rel (%p470) target = $region72
      $region71: #{tpu_custom_call.1} parent=5 // pred_region
        %s474 = ssub.s32 %s28, 1
        %s475 = sand.u32 %s41, 1
        %s476 = scalar_lea.sflag [#allocation3], %s475
        %s477 = sand.u32 %s41, 1
        %s478 = smul.addr %s477, 8
        %s479 = scalar_lea.vmem [#allocation2], %s478
        // Predicated region
        $region73: #{tpu_custom_call.1} parent=71 // pred_check
          %p480 = pneg %p54
        $region74: #{tpu_custom_call.1} parent=71 // pred_check_branch
          %482 = sbr.rel (%p480) target = $region76
        $region75: #{tpu_custom_call.1} parent=71 // pred_region
          %483 = dma.done %s476, 128
        $region76: #{tpu_custom_call.1} parent=71 // pred_fallthru
          _
        // Predicated region
        $region77: #{tpu_custom_call.1} parent=71 // pred_check
          %p484 = pneg %p75
        $region78: #{tpu_custom_call.1} parent=71 // pred_check_branch
          %486 = sbr.rel (%p484) target = $region80
        $region79: #{tpu_custom_call.1} parent=71 // pred_region
          %487 = dma.done [#allocation6], 1024
        $region80: #{tpu_custom_call.1} parent=71 // pred_fallthru
          _
        // Predicated region
        $region81: #{tpu_custom_call.1} parent=71 // pred_check
          %p488 = pneg %p117
        $region82: #{tpu_custom_call.1} parent=71 // pred_check_branch
          %490 = sbr.rel (%p488) target = $region84
        $region83: #{tpu_custom_call.1} parent=71 // pred_region
          %491 = dma.done [#allocation6], 1024
        $region84: #{tpu_custom_call.1} parent=71 // pred_fallthru
          _
        // Predicated region
        $region85: #{tpu_custom_call.1} parent=71 // pred_check
          %p492 = pneg %p159
        $region86: #{tpu_custom_call.1} parent=71 // pred_check_branch
          %494 = sbr.rel (%p492) target = $region88
        $region87: #{tpu_custom_call.1} parent=71 // pred_region
          %495 = dma.done [#allocation9], 1024
        $region88: #{tpu_custom_call.1} parent=71 // pred_fallthru
          _
        // Predicated region
        $region89: #{tpu_custom_call.1} parent=71 // pred_check
          %p496 = pneg %p201
        $region90: #{tpu_custom_call.1} parent=71 // pred_check_branch
          %498 = sbr.rel (%p496) target = $region92
        $region91: #{tpu_custom_call.1} parent=71 // pred_region
          %499 = dma.done [#allocation9], 1024
        $region92: #{tpu_custom_call.1} parent=71 // pred_fallthru
          _
        // Predicated region
        $region93: #{tpu_custom_call.1} parent=71 // pred_check
          %p500 = pneg %p243
        $region94: #{tpu_custom_call.1} parent=71 // pred_check_branch
          %502 = sbr.rel (%p500) target = $region96
        $region95: #{tpu_custom_call.1} parent=71 // pred_region
          %503 = dma.done [#allocation12], 1024
        $region96: #{tpu_custom_call.1} parent=71 // pred_fallthru
          _
        // Predicated region
        $region97: #{tpu_custom_call.1} parent=71 // pred_check
          %p504 = pneg %p285
        $region98: #{tpu_custom_call.1} parent=71 // pred_check_branch
          %506 = sbr.rel (%p504) target = $region100
        $region99: #{tpu_custom_call.1} parent=71 // pred_region
          %507 = dma.done [#allocation12], 1024
        $region100: #{tpu_custom_call.1} parent=71 // pred_fallthru
          _
        %s508 = sand.u32 %s41, 1
        %s509 = scalar_lea.sflag [#allocation3], %s508
        %s510 = sand.u32 %s41, 1
        %s511 = smul.addr %s510, 8
        %s512 = scalar_lea.vmem [#allocation2], %s511
        %p513 = pneg %p54
        %p514 = pneg %p51
        %p515 = pneg %p75
        %p516 = pneg %p72
        %p517 = pneg %p96
        %p518 = pneg %p93
        %p519 = pneg %p117
        %p520 = pneg %p114
        %p521 = pneg %p138
        %p522 = pneg %p135
        %p523 = pneg %p159
        %p524 = pneg %p156
        %p525 = pneg %p180
        %p526 = pneg %p177
        %p527 = pneg %p201
        %p528 = pneg %p198
        %p529 = pneg %p222
        %p530 = pneg %p219
        %p531 = pneg %p243
        %p532 = pneg %p240
        %p533 = pneg %p264
        %p534 = pneg %p261
        %p535 = pneg %p285
        %p536 = pneg %p282
        %p537 = pneg %p306
        %p538 = pneg %p303
        %p539 = pneg %p332
        %p540 = pneg %p329
        %s541 = sand.u32 %s319, 1
        %s542 = scalar_lea.sflag [#allocation4], %s541
        %s543 = sand.u32 %s319, 1
        %s544 = smul.addr %s543, 16
        %s545 = scalar_lea.vmem [#allocation14], %s544
        %s546 = smul.u32 2, %s33
        %s547 = smul.u32 2, %s33
        %v549 = vld [vmem:[%s479] sm:$0xf]
        %v550 = vld [vmem:[%s479 + $0x4] sm:$0xf]
        %v551 = vld [vmem:[#allocation5] sm:$0xf]
        %v552 = vld [vmem:[#allocation5 + $0x4] sm:$0xf]
        %v553 = vld [vmem:[#allocation5 + $0x8] sm:$0xf]
        %v554 = vld [vmem:[#allocation5 + $0xc] sm:$0xf]
        %v555 = vld [vmem:[#allocation5 + $0x10] sm:$0xf]
        %v556 = vld [vmem:[#allocation5 + $0x14] sm:$0xf]
        %v557 = vld [vmem:[#allocation5 + $0x18] sm:$0xf]
        %v558 = vld [vmem:[#allocation5 + $0x1c] sm:$0xf]
        %v559 = vld [vmem:[#allocation5 + $0x20] sm:$0xf]
        %v560 = vld [vmem:[#allocation5 + $0x24] sm:$0xf]
        %v561 = vld [vmem:[#allocation5 + $0x28] sm:$0xf]
        %v562 = vld [vmem:[#allocation5 + $0x2c] sm:$0xf]
        %v563 = vld [vmem:[#allocation5 + $0x30] sm:$0xf]
        %v564 = vld [vmem:[#allocation5 + $0x34] sm:$0xf]
        %v565 = vld [vmem:[#allocation5 + $0x38] sm:$0xf]
        %v566 = vld [vmem:[#allocation5 + $0x3c] sm:$0xf]
        %v567 = vld [vmem:[%s2] sm:$0x1]
        %v569 = vlaneseq
        %v570 = vshrl.u32 %v569, 7
        %v571 = vsub.s32 0, %v570
        %v572 = vrot.slane %v567, %v571
        %v576 = vunpack.c.l.b16 %v549
        %v577 = vunpack.c.l.b16 %v550
        %v578 = vpack.c.b16 %v577, %v576
        %v596 = vunpack.c.l.b16 %v551
        %v597 = vunpack.c.l.b16 %v552
        %v598 = vunpack.c.l.b16 %v553
        %v599 = vunpack.c.l.b16 %v554
        %v600 = vunpack.c.l.b16 %v555
        %v601 = vunpack.c.l.b16 %v556
        %v602 = vunpack.c.l.b16 %v557
        %v603 = vunpack.c.l.b16 %v558
        %v604 = vunpack.c.l.b16 %v559
        %v605 = vunpack.c.l.b16 %v560
        %v606 = vunpack.c.l.b16 %v561
        %v607 = vunpack.c.l.b16 %v562
        %v608 = vunpack.c.l.b16 %v563
        %v609 = vunpack.c.l.b16 %v564
        %v610 = vunpack.c.l.b16 %v565
        %v611 = vunpack.c.l.b16 %v566
        %v612 = vpack.c.b16 %v597, %v596
        %v613 = vpack.c.b16 %v599, %v598
        %v614 = vpack.c.b16 %v601, %v600
        %v615 = vpack.c.b16 %v603, %v602
        %v616 = vpack.c.b16 %v605, %v604
        %v617 = vpack.c.b16 %v607, %v606
        %v618 = vpack.c.b16 %v609, %v608
        %v619 = vpack.c.b16 %v611, %v610
        %628 = vmatprep.subr.bf16.mxu0 0
        %629 = vmatpush1.bf16.msra.mxu0 %v612
        %630 = vmatprep.subr.bf16.mxu0 0
        %631 = vmatpush1.bf16.msra.mxu0 %v613
        %632 = vmatprep.subr.bf16.mxu0 0
        %633 = vmatpush1.bf16.msra.mxu0 %v614
        %634 = vmatprep.subr.bf16.mxu0 0
        %635 = vmatpush1.bf16.msra.mxu0 %v615
        %636 = vmatprep.subr.bf16.mxu0 0
        %637 = vmatpush1.bf16.msra.mxu0 %v616
        %638 = vmatprep.subr.bf16.mxu0 0
        %639 = vmatpush1.bf16.msra.mxu0 %v617
        %640 = vmatprep.subr.bf16.mxu0 0
        %641 = vmatpush1.bf16.msra.mxu0 %v618
        %642 = vmatprep.subr.bf16.mxu0 0
        %643 = vmatpush1.bf16.msra.mxu0 %v619
        %644 = vmatprep.subr.bf16.mxu0 0
        %645 = vmatpush1.bf16.msra.mxu0 0
        %646 = vmatprep.subr.bf16.mxu0 0
        %647 = vmatpush1.bf16.msra.mxu0 0
        %648 = vmatprep.subr.bf16.mxu0 0
        %649 = vmatpush1.bf16.msra.mxu0 0
        %650 = vmatprep.subr.bf16.mxu0 0
        %651 = vmatpush1.bf16.msra.mxu0 0
        %652 = vmatprep.subr.bf16.mxu0 0
        %653 = vmatpush1.bf16.msra.mxu0 0
        %654 = vmatprep.subr.bf16.mxu0 0
        %655 = vmatpush1.bf16.msra.mxu0 0
        %656 = vmatprep.subr.bf16.mxu0 0
        %657 = vmatpush1.bf16.msra.mxu0 0
        %658 = vmatprep.subr.bf16.mxu0 0
        %659 = vmatpush1.bf16.msra.mxu0 0
        %660 = vmatprep.mubr.bf16.mxu0 0
        %661 = vmatmul.mubr.bf16.gmra.mrb[0].mxu0 %v578
        %v662 = vpop.f32.mrb[0].mxu0
        %v663 = vadd.f32 %v572, %v662
        %v664 = vpop.f32.mrb[0].mxu0
        %v665 = vpop.f32.mrb[0].mxu0
        %v666 = vadd.f32 %v572, %v665
        %v667 = vpop.f32.mrb[0].mxu0
        %668 = vdwg.mxu0
        %v669 = vpack.c.bf16 %v666, %v663
        %v670 = vld [vmem:[#allocation7] sm:$0xf]
        %v671 = vld [vmem:[#allocation7 + $0x4] sm:$0xf]
        %v672 = vld [vmem:[#allocation7 + $0x8] sm:$0xf]
        %v673 = vld [vmem:[#allocation7 + $0xc] sm:$0xf]
        %v674 = vld [vmem:[#allocation7 + $0x10] sm:$0xf]
        %v675 = vld [vmem:[#allocation7 + $0x14] sm:$0xf]
        %v676 = vld [vmem:[#allocation7 + $0x18] sm:$0xf]
        %v677 = vld [vmem:[#allocation7 + $0x1c] sm:$0xf]
        %v678 = vld [vmem:[#allocation7 + $0x20] sm:$0xf]
        %v679 = vld [vmem:[#allocation7 + $0x24] sm:$0xf]
        %v680 = vld [vmem:[#allocation7 + $0x28] sm:$0xf]
        %v681 = vld [vmem:[#allocation7 + $0x2c] sm:$0xf]
        %v682 = vld [vmem:[#allocation7 + $0x30] sm:$0xf]
        %v683 = vld [vmem:[#allocation7 + $0x34] sm:$0xf]
        %v684 = vld [vmem:[#allocation7 + $0x38] sm:$0xf]
        %v685 = vld [vmem:[#allocation7 + $0x3c] sm:$0xf]
        %v686 = vld [vmem:[%s4] sm:$0x1]
        %v688 = vlaneseq
        %v689 = vshrl.u32 %v688, 7
        %v690 = vsub.s32 0, %v689
        %v691 = vrot.slane %v686, %v690
        %v709 = vunpack.c.l.b16 %v670
        %v710 = vunpack.c.l.b16 %v671
        %v711 = vunpack.c.l.b16 %v672
        %v712 = vunpack.c.l.b16 %v673
        %v713 = vunpack.c.l.b16 %v674
        %v714 = vunpack.c.l.b16 %v675
        %v715 = vunpack.c.l.b16 %v676
        %v716 = vunpack.c.l.b16 %v677
        %v717 = vunpack.c.l.b16 %v678
        %v718 = vunpack.c.l.b16 %v679
        %v719 = vunpack.c.l.b16 %v680
        %v720 = vunpack.c.l.b16 %v681
        %v721 = vunpack.c.l.b16 %v682
        %v722 = vunpack.c.l.b16 %v683
        %v723 = vunpack.c.l.b16 %v684
        %v724 = vunpack.c.l.b16 %v685
        %v725 = vpack.c.b16 %v710, %v709
        %v726 = vpack.c.b16 %v712, %v711
        %v727 = vpack.c.b16 %v714, %v713
        %v728 = vpack.c.b16 %v716, %v715
        %v729 = vpack.c.b16 %v718, %v717
        %v730 = vpack.c.b16 %v720, %v719
        %v731 = vpack.c.b16 %v722, %v721
        %v732 = vpack.c.b16 %v724, %v723
        %741 = vmatprep.subr.bf16.mxu0 0
        %742 = vmatpush1.bf16.msra.mxu0 %v725
        %743 = vmatprep.subr.bf16.mxu0 0
        %744 = vmatpush1.bf16.msra.mxu0 %v726
        %745 = vmatprep.subr.bf16.mxu0 0
        %746 = vmatpush1.bf16.msra.mxu0 %v727
        %747 = vmatprep.subr.bf16.mxu0 0
        %748 = vmatpush1.bf16.msra.mxu0 %v728
        %749 = vmatprep.subr.bf16.mxu0 0
        %750 = vmatpush1.bf16.msra.mxu0 %v729
        %751 = vmatprep.subr.bf16.mxu0 0
        %752 = vmatpush1.bf16.msra.mxu0 %v730
        %753 = vmatprep.subr.bf16.mxu0 0
        %754 = vmatpush1.bf16.msra.mxu0 %v731
        %755 = vmatprep.subr.bf16.mxu0 0
        %756 = vmatpush1.bf16.msra.mxu0 %v732
        %757 = vmatprep.subr.bf16.mxu0 0
        %758 = vmatpush1.bf16.msra.mxu0 0
        %759 = vmatprep.subr.bf16.mxu0 0
        %760 = vmatpush1.bf16.msra.mxu0 0
        %761 = vmatprep.subr.bf16.mxu0 0
        %762 = vmatpush1.bf16.msra.mxu0 0
        %763 = vmatprep.subr.bf16.mxu0 0
        %764 = vmatpush1.bf16.msra.mxu0 0
        %765 = vmatprep.subr.bf16.mxu0 0
        %766 = vmatpush1.bf16.msra.mxu0 0
        %767 = vmatprep.subr.bf16.mxu0 0
        %768 = vmatpush1.bf16.msra.mxu0 0
        %769 = vmatprep.subr.bf16.mxu0 0
        %770 = vmatpush1.bf16.msra.mxu0 0
        %771 = vmatprep.subr.bf16.mxu0 0
        %772 = vmatpush1.bf16.msra.mxu0 0
        %773 = vmatprep.mubr.bf16.mxu0 0
        %774 = vmatmul.mubr.bf16.gmra.mrb[0].mxu0 %v669
        %v775 = vpop.f32.mrb[0].mxu0
        %v776 = vadd.f32 %v691, %v775
        %v777 = vpop.f32.mrb[0].mxu0
        %v778 = vpop.f32.mrb[0].mxu0
        %v779 = vadd.f32 %v691, %v778
        %v780 = vpop.f32.mrb[0].mxu0
        %781 = vdwg.mxu0
        %v782 = vmax.f32 %v776, 0.0
        %v783 = vmax.f32 %v779, 0.0
        %v784 = vpack.c.bf16 %v783, %v782
        %v785 = vld [vmem:[#allocation8] sm:$0xf]
        %v786 = vld [vmem:[#allocation8 + $0x4] sm:$0xf]
        %v787 = vld [vmem:[#allocation8 + $0x8] sm:$0xf]
        %v788 = vld [vmem:[#allocation8 + $0xc] sm:$0xf]
        %v789 = vld [vmem:[#allocation8 + $0x10] sm:$0xf]
        %v790 = vld [vmem:[#allocation8 + $0x14] sm:$0xf]
        %v791 = vld [vmem:[#allocation8 + $0x18] sm:$0xf]
        %v792 = vld [vmem:[#allocation8 + $0x1c] sm:$0xf]
        %v793 = vld [vmem:[#allocation8 + $0x20] sm:$0xf]
        %v794 = vld [vmem:[#allocation8 + $0x24] sm:$0xf]
        %v795 = vld [vmem:[#allocation8 + $0x28] sm:$0xf]
        %v796 = vld [vmem:[#allocation8 + $0x2c] sm:$0xf]
        %v797 = vld [vmem:[#allocation8 + $0x30] sm:$0xf]
        %v798 = vld [vmem:[#allocation8 + $0x34] sm:$0xf]
        %v799 = vld [vmem:[#allocation8 + $0x38] sm:$0xf]
        %v800 = vld [vmem:[#allocation8 + $0x3c] sm:$0xf]
        %v801 = vld [vmem:[%s6] sm:$0x1]
        %v803 = vlaneseq
        %v804 = vshrl.u32 %v803, 7
        %v805 = vsub.s32 0, %v804
        %v806 = vrot.slane %v801, %v805
        %v824 = vunpack.c.l.b16 %v785
        %v825 = vunpack.c.l.b16 %v786
        %v826 = vunpack.c.l.b16 %v787
        %v827 = vunpack.c.l.b16 %v788
        %v828 = vunpack.c.l.b16 %v789
        %v829 = vunpack.c.l.b16 %v790
        %v830 = vunpack.c.l.b16 %v791
        %v831 = vunpack.c.l.b16 %v792
        %v832 = vunpack.c.l.b16 %v793
        %v833 = vunpack.c.l.b16 %v794
        %v834 = vunpack.c.l.b16 %v795
        %v835 = vunpack.c.l.b16 %v796
        %v836 = vunpack.c.l.b16 %v797
        %v837 = vunpack.c.l.b16 %v798
        %v838 = vunpack.c.l.b16 %v799
        %v839 = vunpack.c.l.b16 %v800
        %v840 = vpack.c.b16 %v825, %v824
        %v841 = vpack.c.b16 %v827, %v826
        %v842 = vpack.c.b16 %v829, %v828
        %v843 = vpack.c.b16 %v831, %v830
        %v844 = vpack.c.b16 %v833, %v832
        %v845 = vpack.c.b16 %v835, %v834
        %v846 = vpack.c.b16 %v837, %v836
        %v847 = vpack.c.b16 %v839, %v838
        %856 = vmatprep.subr.bf16.mxu0 0
        %857 = vmatpush1.bf16.msra.mxu0 %v840
        %858 = vmatprep.subr.bf16.mxu0 0
        %859 = vmatpush1.bf16.msra.mxu0 %v841
        %860 = vmatprep.subr.bf16.mxu0 0
        %861 = vmatpush1.bf16.msra.mxu0 %v842
        %862 = vmatprep.subr.bf16.mxu0 0
        %863 = vmatpush1.bf16.msra.mxu0 %v843
        %864 = vmatprep.subr.bf16.mxu0 0
        %865 = vmatpush1.bf16.msra.mxu0 %v844
        %866 = vmatprep.subr.bf16.mxu0 0
        %867 = vmatpush1.bf16.msra.mxu0 %v845
        %868 = vmatprep.subr.bf16.mxu0 0
        %869 = vmatpush1.bf16.msra.mxu0 %v846
        %870 = vmatprep.subr.bf16.mxu0 0
        %871 = vmatpush1.bf16.msra.mxu0 %v847
        %872 = vmatprep.subr.bf16.mxu0 0
        %873 = vmatpush1.bf16.msra.mxu0 0
        %874 = vmatprep.subr.bf16.mxu0 0
        %875 = vmatpush1.bf16.msra.mxu0 0
        %876 = vmatprep.subr.bf16.mxu0 0
        %877 = vmatpush1.bf16.msra.mxu0 0
        %878 = vmatprep.subr.bf16.mxu0 0
        %879 = vmatpush1.bf16.msra.mxu0 0
        %880 = vmatprep.subr.bf16.mxu0 0
        %881 = vmatpush1.bf16.msra.mxu0 0
        %882 = vmatprep.subr.bf16.mxu0 0
        %883 = vmatpush1.bf16.msra.mxu0 0
        %884 = vmatprep.subr.bf16.mxu0 0
        %885 = vmatpush1.bf16.msra.mxu0 0
        %886 = vmatprep.subr.bf16.mxu0 0
        %887 = vmatpush1.bf16.msra.mxu0 0
        %888 = vmatprep.mubr.bf16.mxu0 0
        %889 = vmatmul.mubr.bf16.gmra.mrb[0].mxu0 %v784
        %v890 = vpop.f32.mrb[0].mxu0
        %v891 = vadd.f32 %v806, %v890
        %v892 = vpop.f32.mrb[0].mxu0
        %v893 = vpop.f32.mrb[0].mxu0
        %v894 = vadd.f32 %v806, %v893
        %v895 = vpop.f32.mrb[0].mxu0
        %896 = vdwg.mxu0
        %v897 = vpack.c.bf16 %v894, %v891
        %v898 = vld [vmem:[#allocation10] sm:$0xf]
        %v899 = vld [vmem:[#allocation10 + $0x4] sm:$0xf]
        %v900 = vld [vmem:[#allocation10 + $0x8] sm:$0xf]
        %v901 = vld [vmem:[#allocation10 + $0xc] sm:$0xf]
        %v902 = vld [vmem:[#allocation10 + $0x10] sm:$0xf]
        %v903 = vld [vmem:[#allocation10 + $0x14] sm:$0xf]
        %v904 = vld [vmem:[#allocation10 + $0x18] sm:$0xf]
        %v905 = vld [vmem:[#allocation10 + $0x1c] sm:$0xf]
        %v906 = vld [vmem:[#allocation10 + $0x20] sm:$0xf]
        %v907 = vld [vmem:[#allocation10 + $0x24] sm:$0xf]
        %v908 = vld [vmem:[#allocation10 + $0x28] sm:$0xf]
        %v909 = vld [vmem:[#allocation10 + $0x2c] sm:$0xf]
        %v910 = vld [vmem:[#allocation10 + $0x30] sm:$0xf]
        %v911 = vld [vmem:[#allocation10 + $0x34] sm:$0xf]
        %v912 = vld [vmem:[#allocation10 + $0x38] sm:$0xf]
        %v913 = vld [vmem:[#allocation10 + $0x3c] sm:$0xf]
        %v914 = vld [vmem:[%s8] sm:$0x1]
        %v916 = vlaneseq
        %v917 = vshrl.u32 %v916, 7
        %v918 = vsub.s32 0, %v917
        %v919 = vrot.slane %v914, %v918
        %v937 = vunpack.c.l.b16 %v898
        %v938 = vunpack.c.l.b16 %v899
        %v939 = vunpack.c.l.b16 %v900
        %v940 = vunpack.c.l.b16 %v901
        %v941 = vunpack.c.l.b16 %v902
        %v942 = vunpack.c.l.b16 %v903
        %v943 = vunpack.c.l.b16 %v904
        %v944 = vunpack.c.l.b16 %v905
        %v945 = vunpack.c.l.b16 %v906
        %v946 = vunpack.c.l.b16 %v907
        %v947 = vunpack.c.l.b16 %v908
        %v948 = vunpack.c.l.b16 %v909
        %v949 = vunpack.c.l.b16 %v910
        %v950 = vunpack.c.l.b16 %v911
        %v951 = vunpack.c.l.b16 %v912
        %v952 = vunpack.c.l.b16 %v913
        %v953 = vpack.c.b16 %v938, %v937
        %v954 = vpack.c.b16 %v940, %v939
        %v955 = vpack.c.b16 %v942, %v941
        %v956 = vpack.c.b16 %v944, %v943
        %v957 = vpack.c.b16 %v946, %v945
        %v958 = vpack.c.b16 %v948, %v947
        %v959 = vpack.c.b16 %v950, %v949
        %v960 = vpack.c.b16 %v952, %v951
        %969 = vmatprep.subr.bf16.mxu0 0
        %970 = vmatpush1.bf16.msra.mxu0 %v953
        %971 = vmatprep.subr.bf16.mxu0 0
        %972 = vmatpush1.bf16.msra.mxu0 %v954
        %973 = vmatprep.subr.bf16.mxu0 0
        %974 = vmatpush1.bf16.msra.mxu0 %v955
        %975 = vmatprep.subr.bf16.mxu0 0
        %976 = vmatpush1.bf16.msra.mxu0 %v956
        %977 = vmatprep.subr.bf16.mxu0 0
        %978 = vmatpush1.bf16.msra.mxu0 %v957
        %979 = vmatprep.subr.bf16.mxu0 0
        %980 = vmatpush1.bf16.msra.mxu0 %v958
        %981 = vmatprep.subr.bf16.mxu0 0
        %982 = vmatpush1.bf16.msra.mxu0 %v959
        %983 = vmatprep.subr.bf16.mxu0 0
        %984 = vmatpush1.bf16.msra.mxu0 %v960
        %985 = vmatprep.subr.bf16.mxu0 0
        %986 = vmatpush1.bf16.msra.mxu0 0
        %987 = vmatprep.subr.bf16.mxu0 0
        %988 = vmatpush1.bf16.msra.mxu0 0
        %989 = vmatprep.subr.bf16.mxu0 0
        %990 = vmatpush1.bf16.msra.mxu0 0
        %991 = vmatprep.subr.bf16.mxu0 0
        %992 = vmatpush1.bf16.msra.mxu0 0
        %993 = vmatprep.subr.bf16.mxu0 0
        %994 = vmatpush1.bf16.msra.mxu0 0
        %995 = vmatprep.subr.bf16.mxu0 0
        %996 = vmatpush1.bf16.msra.mxu0 0
        %997 = vmatprep.subr.bf16.mxu0 0
        %998 = vmatpush1.bf16.msra.mxu0 0
        %999 = vmatprep.subr.bf16.mxu0 0
        %1000 = vmatpush1.bf16.msra.mxu0 0
        %1001 = vmatprep.mubr.bf16.mxu0 0
        %1002 = vmatmul.mubr.bf16.gmra.mrb[0].mxu0 %v897
        %v1003 = vpop.f32.mrb[0].mxu0
        %v1004 = vadd.f32 %v919, %v1003
        %v1005 = vpop.f32.mrb[0].mxu0
        %v1006 = vpop.f32.mrb[0].mxu0
        %v1007 = vadd.f32 %v919, %v1006
        %v1008 = vpop.f32.mrb[0].mxu0
        %1009 = vdwg.mxu0
        %v1010 = vpack.c.bf16 %v1007, %v1004
        %v1011 = vld [vmem:[#allocation11] sm:$0xf]
        %v1012 = vld [vmem:[#allocation11 + $0x4] sm:$0xf]
        %v1013 = vld [vmem:[#allocation11 + $0x8] sm:$0xf]
        %v1014 = vld [vmem:[#allocation11 + $0xc] sm:$0xf]
        %v1015 = vld [vmem:[#allocation11 + $0x10] sm:$0xf]
        %v1016 = vld [vmem:[#allocation11 + $0x14] sm:$0xf]
        %v1017 = vld [vmem:[#allocation11 + $0x18] sm:$0xf]
        %v1018 = vld [vmem:[#allocation11 + $0x1c] sm:$0xf]
        %v1019 = vld [vmem:[#allocation11 + $0x20] sm:$0xf]
        %v1020 = vld [vmem:[#allocation11 + $0x24] sm:$0xf]
        %v1021 = vld [vmem:[#allocation11 + $0x28] sm:$0xf]
        %v1022 = vld [vmem:[#allocation11 + $0x2c] sm:$0xf]
        %v1023 = vld [vmem:[#allocation11 + $0x30] sm:$0xf]
        %v1024 = vld [vmem:[#allocation11 + $0x34] sm:$0xf]
        %v1025 = vld [vmem:[#allocation11 + $0x38] sm:$0xf]
        %v1026 = vld [vmem:[#allocation11 + $0x3c] sm:$0xf]
        %v1027 = vld [vmem:[%s10] sm:$0x1]
        %v1029 = vlaneseq
        %v1030 = vshrl.u32 %v1029, 7
        %v1031 = vsub.s32 0, %v1030
        %v1032 = vrot.slane %v1027, %v1031
        %v1050 = vunpack.c.l.b16 %v1011
        %v1051 = vunpack.c.l.b16 %v1012
        %v1052 = vunpack.c.l.b16 %v1013
        %v1053 = vunpack.c.l.b16 %v1014
        %v1054 = vunpack.c.l.b16 %v1015
        %v1055 = vunpack.c.l.b16 %v1016
        %v1056 = vunpack.c.l.b16 %v1017
        %v1057 = vunpack.c.l.b16 %v1018
        %v1058 = vunpack.c.l.b16 %v1019
        %v1059 = vunpack.c.l.b16 %v1020
        %v1060 = vunpack.c.l.b16 %v1021
        %v1061 = vunpack.c.l.b16 %v1022
        %v1062 = vunpack.c.l.b16 %v1023
        %v1063 = vunpack.c.l.b16 %v1024
        %v1064 = vunpack.c.l.b16 %v1025
        %v1065 = vunpack.c.l.b16 %v1026
        %v1066 = vpack.c.b16 %v1051, %v1050
        %v1067 = vpack.c.b16 %v1053, %v1052
        %v1068 = vpack.c.b16 %v1055, %v1054
        %v1069 = vpack.c.b16 %v1057, %v1056
        %v1070 = vpack.c.b16 %v1059, %v1058
        %v1071 = vpack.c.b16 %v1061, %v1060
        %v1072 = vpack.c.b16 %v1063, %v1062
        %v1073 = vpack.c.b16 %v1065, %v1064
        %1082 = vmatprep.subr.bf16.mxu0 0
        %1083 = vmatpush1.bf16.msra.mxu0 %v1066
        %1084 = vmatprep.subr.bf16.mxu0 0
        %1085 = vmatpush1.bf16.msra.mxu0 %v1067
        %1086 = vmatprep.subr.bf16.mxu0 0
        %1087 = vmatpush1.bf16.msra.mxu0 %v1068
        %1088 = vmatprep.subr.bf16.mxu0 0
        %1089 = vmatpush1.bf16.msra.mxu0 %v1069
        %1090 = vmatprep.subr.bf16.mxu0 0
        %1091 = vmatpush1.bf16.msra.mxu0 %v1070
        %1092 = vmatprep.subr.bf16.mxu0 0
        %1093 = vmatpush1.bf16.msra.mxu0 %v1071
        %1094 = vmatprep.subr.bf16.mxu0 0
        %1095 = vmatpush1.bf16.msra.mxu0 %v1072
        %1096 = vmatprep.subr.bf16.mxu0 0
        %1097 = vmatpush1.bf16.msra.mxu0 %v1073
        %1098 = vmatprep.subr.bf16.mxu0 0
        %1099 = vmatpush1.bf16.msra.mxu0 0
        %1100 = vmatprep.subr.bf16.mxu0 0
        %1101 = vmatpush1.bf16.msra.mxu0 0
        %1102 = vmatprep.subr.bf16.mxu0 0
        %1103 = vmatpush1.bf16.msra.mxu0 0
        %1104 = vmatprep.subr.bf16.mxu0 0
        %1105 = vmatpush1.bf16.msra.mxu0 0
        %1106 = vmatprep.subr.bf16.mxu0 0
        %1107 = vmatpush1.bf16.msra.mxu0 0
        %1108 = vmatprep.subr.bf16.mxu0 0
        %1109 = vmatpush1.bf16.msra.mxu0 0
        %1110 = vmatprep.subr.bf16.mxu0 0
        %1111 = vmatpush1.bf16.msra.mxu0 0
        %1112 = vmatprep.subr.bf16.mxu0 0
        %1113 = vmatpush1.bf16.msra.mxu0 0
        %1114 = vmatprep.mubr.bf16.mxu0 0
        %1115 = vmatmul.mubr.bf16.gmra.mrb[0].mxu0 %v1010
        %v1116 = vpop.f32.mrb[0].mxu0
        %v1117 = vadd.f32 %v1032, %v1116
        %v1118 = vpop.f32.mrb[0].mxu0
        %v1119 = vpop.f32.mrb[0].mxu0
        %v1120 = vadd.f32 %v1032, %v1119
        %v1121 = vpop.f32.mrb[0].mxu0
        %1122 = vdwg.mxu0
        %v1123 = vmax.f32 %v1117, 0.0
        %v1124 = vmax.f32 %v1120, 0.0
        %v1125 = vpack.c.bf16 %v1124, %v1123
        %v1126 = vld [vmem:[#allocation13] sm:$0xf]
        %v1127 = vld [vmem:[#allocation13 + $0x4] sm:$0xf]
        %v1128 = vld [vmem:[#allocation13 + $0x8] sm:$0xf]
        %v1129 = vld [vmem:[#allocation13 + $0xc] sm:$0xf]
        %v1130 = vld [vmem:[#allocation13 + $0x10] sm:$0xf]
        %v1131 = vld [vmem:[#allocation13 + $0x14] sm:$0xf]
        %v1132 = vld [vmem:[#allocation13 + $0x18] sm:$0xf]
        %v1133 = vld [vmem:[#allocation13 + $0x1c] sm:$0xf]
        %v1134 = vld [vmem:[#allocation13 + $0x20] sm:$0xf]
        %v1135 = vld [vmem:[#allocation13 + $0x24] sm:$0xf]
        %v1136 = vld [vmem:[#allocation13 + $0x28] sm:$0xf]
        %v1137 = vld [vmem:[#allocation13 + $0x2c] sm:$0xf]
        %v1138 = vld [vmem:[#allocation13 + $0x30] sm:$0xf]
        %v1139 = vld [vmem:[#allocation13 + $0x34] sm:$0xf]
        %v1140 = vld [vmem:[#allocation13 + $0x38] sm:$0xf]
        %v1141 = vld [vmem:[#allocation13 + $0x3c] sm:$0xf]
        %v1142 = vld [vmem:[%s12] sm:$0x1]
        %v1144 = vlaneseq
        %v1145 = vshrl.u32 %v1144, 7
        %v1146 = vsub.s32 0, %v1145
        %v1147 = vrot.slane %v1142, %v1146
        %v1165 = vunpack.c.l.b16 %v1126
        %v1166 = vunpack.c.l.b16 %v1127
        %v1167 = vunpack.c.l.b16 %v1128
        %v1168 = vunpack.c.l.b16 %v1129
        %v1169 = vunpack.c.l.b16 %v1130
        %v1170 = vunpack.c.l.b16 %v1131
        %v1171 = vunpack.c.l.b16 %v1132
        %v1172 = vunpack.c.l.b16 %v1133
        %v1173 = vunpack.c.l.b16 %v1134
        %v1174 = vunpack.c.l.b16 %v1135
        %v1175 = vunpack.c.l.b16 %v1136
        %v1176 = vunpack.c.l.b16 %v1137
        %v1177 = vunpack.c.l.b16 %v1138
        %v1178 = vunpack.c.l.b16 %v1139
        %v1179 = vunpack.c.l.b16 %v1140
        %v1180 = vunpack.c.l.b16 %v1141
        %v1181 = vpack.c.b16 %v1166, %v1165
        %v1182 = vpack.c.b16 %v1168, %v1167
        %v1183 = vpack.c.b16 %v1170, %v1169
        %v1184 = vpack.c.b16 %v1172, %v1171
        %v1185 = vpack.c.b16 %v1174, %v1173
        %v1186 = vpack.c.b16 %v1176, %v1175
        %v1187 = vpack.c.b16 %v1178, %v1177
        %v1188 = vpack.c.b16 %v1180, %v1179
        %1197 = vmatprep.subr.bf16.mxu0 0
        %1198 = vmatpush1.bf16.msra.mxu0 %v1181
        %1199 = vmatprep.subr.bf16.mxu0 0
        %1200 = vmatpush1.bf16.msra.mxu0 %v1182
        %1201 = vmatprep.subr.bf16.mxu0 0
        %1202 = vmatpush1.bf16.msra.mxu0 %v1183
        %1203 = vmatprep.subr.bf16.mxu0 0
        %1204 = vmatpush1.bf16.msra.mxu0 %v1184
        %1205 = vmatprep.subr.bf16.mxu0 0
        %1206 = vmatpush1.bf16.msra.mxu0 %v1185
        %1207 = vmatprep.subr.bf16.mxu0 0
        %1208 = vmatpush1.bf16.msra.mxu0 %v1186
        %1209 = vmatprep.subr.bf16.mxu0 0
        %1210 = vmatpush1.bf16.msra.mxu0 %v1187
        %1211 = vmatprep.subr.bf16.mxu0 0
        %1212 = vmatpush1.bf16.msra.mxu0 %v1188
        %1213 = vmatprep.subr.bf16.mxu0 0
        %1214 = vmatpush1.bf16.msra.mxu0 0
        %1215 = vmatprep.subr.bf16.mxu0 0
        %1216 = vmatpush1.bf16.msra.mxu0 0
        %1217 = vmatprep.subr.bf16.mxu0 0
        %1218 = vmatpush1.bf16.msra.mxu0 0
        %1219 = vmatprep.subr.bf16.mxu0 0
        %1220 = vmatpush1.bf16.msra.mxu0 0
        %1221 = vmatprep.subr.bf16.mxu0 0
        %1222 = vmatpush1.bf16.msra.mxu0 0
        %1223 = vmatprep.subr.bf16.mxu0 0
        %1224 = vmatpush1.bf16.msra.mxu0 0
        %1225 = vmatprep.subr.bf16.mxu0 0
        %1226 = vmatpush1.bf16.msra.mxu0 0
        %1227 = vmatprep.subr.bf16.mxu0 0
        %1228 = vmatpush1.bf16.msra.mxu0 0
        %1229 = vmatprep.mubr.bf16.mxu0 0
        %1230 = vmatmul.mubr.bf16.gmra.mrb[0].mxu0 %v1125
        %v1231 = vpop.f32.mrb[0].mxu0
        %v1232 = vadd.f32 %v1147, %v1231
        %v1233 = vpop.f32.mrb[0].mxu0
        %v1234 = vpop.f32.mrb[0].mxu0
        %v1235 = vadd.f32 %v1147, %v1234
        %v1236 = vpop.f32.mrb[0].mxu0
        %1237 = vdwg.mxu0
        %v1238 = vsub.f32 0.0, %v1232
        %v1239 = vsub.f32 0.0, %v1235
        %v1240 = vmul.f32 %v1238, 1.442695
        %v1241 = vpow.pop %v1240
        %v1242 = vmul.f32 %v1239, 1.442695
        %v1243 = vpow.pop %v1242
        %v1244 = vadd.f32 %v1241, 1.0
        %v1245 = vadd.f32 %v1243, 1.0
        %v1246 = vrcp.pop %v1244
        %v1247 = vrcp.pop %v1245
        %1248 = vst [vmem:[%s545] sm:$0xff] %v1246
        %1249 = vst [vmem:[%s545 + $0x8] sm:$0xff] %v1247
        %s1250 = sand.u32 %s319, 1
        %s1251 = scalar_lea.sflag [#allocation4], %s1250
        %s1252 = sand.u32 %s319, 1
        %s1253 = smul.addr %s1252, 16
        %s1254 = scalar_lea.vmem [#allocation14], %s1253
        // Predicated region
        $region101: #{tpu_custom_call.1} parent=71 // pred_check
          %p1255 = pneg %p329
        $region102: #{tpu_custom_call.1} parent=71 // pred_check_branch
          %1257 = sbr.rel (%p1255) target = $region104
        $region103: #{tpu_custom_call.1} parent=71 // pred_region
          %s1258 = smul.u32 2, %s33
          %s1260 = ssub.s32 256, 256
          %1261 = vsyncadd %s1251, %s1260
          %s1262 = smul.addr %s1258, 128
          %s1263 = scalar_lea.hbm %s13, %s1262
          %s1264 = sshll.u32 %s1254, 4
          %s1265 = int_to_ptr.vmem [resolvable:$true] %s1264
          %1270 = dma.vmem_to_hbm [thread:$0]  %s1265, 256, %s1263, %s1251, 128, 128, 8
        $region104: #{tpu_custom_call.1} parent=71 // pred_fallthru
          _
      $region72: #{tpu_custom_call.1} parent=5 // pred_fallthru
        _
      %p1271 = scmp.le.s32.totalorder 2, %s28
      // Predicated region
      $region105: #{tpu_custom_call.1} parent=5 // pred_check
        %p1272 = pneg %p1271
      $region106: #{tpu_custom_call.1} parent=5 // pred_check_branch
        %1274 = sbr.rel (%p1272) target = $region108
      $region107: #{tpu_custom_call.1} parent=5 // pred_region
        %s1275 = ssub.s32 %s28, 2
        // Predicated region
        $region109: #{tpu_custom_call.1} parent=107 // pred_check
          %p1276 = pneg %p335
        $region110: #{tpu_custom_call.1} parent=107 // pred_check_branch
          %1278 = sbr.rel (%p1276) target = $region112
        $region111: #{tpu_custom_call.1} parent=107 // pred_region
          %s1279 = sand.u32 %s320, 1
          %s1280 = scalar_lea.sflag [#allocation4], %s1279
          %s1281 = sand.u32 %s320, 1
          %s1282 = smul.addr %s1281, 16
          %s1283 = scalar_lea.vmem [#allocation14], %s1282
          %1284 = dma.done %s1280, 256
        $region112: #{tpu_custom_call.1} parent=107 // pred_fallthru
          _
      $region108: #{tpu_custom_call.1} parent=5 // pred_fallthru
        _
    $region6: #{tpu_custom_call.1} parent=1 // loop_footer
      %s32 = sadd.s32 1, %s28
    $region7: #{tpu_custom_call.1} parent=1 // loop_footer_branch
      %27 = sbr.rel target = $region3
    $region8: #{tpu_custom_call.1} parent=1 // loop_exit
      _
    %1285 = vsyncpa [#allocation3], 1
    %s1286 = scalar_lea.sflag [#allocation3], 1
    %1287 = vsyncpa %s1286, 1
    %1288 = vsyncpa [#allocation6], 1
    %1289 = vsyncpa [#allocation9], 1
    %1290 = vsyncpa [#allocation12], 1
    %1291 = vsyncpa [#allocation4], 1
    %s1292 = scalar_lea.sflag [#allocation4], 1
    %1293 = vsyncpa %s1292, 1

// kernel: tpu_custom_call.1
$region0: #{tpu_custom_call.1}
  #allocation0 [shape = 'u32[]', space=smem, size = 0x4, offset = 0x4, fixed_abs, tag = 'smem constant byte address 0x4 - core index']
  #allocation1 [shape = 'u32[144,128]{1,0:T(1,128)}', space=vmem, size = 0x12000, scoped, tag = 'internal scratch']
  %s0 = inlined_call_operand.hbm [shape: bf16[32,128], index: 0, kind: input, shape index: {}]
  %s1 = inlined_call_operand.hbm [shape: bf16[128,128], index: 1, kind: input, shape index: {}]
  %s2 = inlined_call_operand.vmem [shape: f32[1,128], index: 2, kind: input, shape index: {}]
  %s3 = inlined_call_operand.hbm [shape: bf16[128,128], index: 3, kind: input, shape index: {}]
  %s4 = inlined_call_operand.vmem [shape: f32[1,128], index: 4, kind: input, shape index: {}]
  %s5 = inlined_call_operand.hbm [shape: bf16[128,128], index: 5, kind: input, shape index: {}]
  %s6 = inlined_call_operand.vmem [shape: f32[1,128], index: 6, kind: input, shape index: {}]
  %s7 = inlined_call_operand.hbm [shape: bf16[128,128], index: 7, kind: input, shape index: {}]
  %s8 = inlined_call_operand.vmem [shape: f32[1,128], index: 8, kind: input, shape index: {}]
  %s9 = inlined_call_operand.hbm [shape: bf16[128,128], index: 9, kind: input, shape index: {}]
  %s10 = inlined_call_operand.vmem [shape: f32[1,128], index: 10, kind: input, shape index: {}]
  %s11 = inlined_call_operand.hbm [shape: bf16[128,128], index: 11, kind: input, shape index: {}]
  %s12 = inlined_call_operand.vmem [shape: f32[1,128], index: 12, kind: input, shape index: {}]
  %s13 = inlined_call_operand.hbm [shape: f32[32,128], index: 13, kind: output, shape index: {}]
  %s14 = sld [smem:[#allocation0]]
  $region113: #{tpu_custom_call.1} parent=0
    _
  %s16 = ssub.s32 1, %s14
  %s17 = scalar_select 0, %s16, %s14
  $region1: #{tpu_custom_call.1} parent=0
    #allocation2 [shape = 'u8[8192]{0}', space=vmem, size = 0x2000, scoped, tag = 'input window, operand 0']
    #allocation3 [shape = 's32[2]{0}', space=sflag, size = 0x8, scoped, tag = 'scoped memory for tpu_custom_call.1']
    #allocation4 [shape = 's32[2]{0}', space=sflag, size = 0x8, scoped, tag = 'scoped memory for tpu_custom_call.1']
    #allocation5 [shape = 'u8[32768]{0}', space=vmem, size = 0x8000, scoped, tag = 'input window, operand 1, single buffered']
    #allocation6 [shape = 's32[1]{0}', space=sflag, size = 0x4, scoped, tag = 'scoped memory for tpu_custom_call.1']
    #allocation7 [shape = 'u8[32768]{0}', space=vmem, size = 0x8000, scoped, tag = 'input window, operand 3, single buffered']
    #allocation8 [shape = 'u8[32768]{0}', space=vmem, size = 0x8000, scoped, tag = 'input window, operand 5, single buffered']
    #allocation9 [shape = 's32[1]{0}', space=sflag, size = 0x4, scoped, tag = 'scoped memory for tpu_custom_call.1']
    #allocation10 [shape = 'u8[32768]{0}', space=vmem, size = 0x8000, scoped, tag = 'input window, operand 7, single buffered']
    #allocation11 [shape = 'u8[32768]{0}', space=vmem, size = 0x8000, scoped, tag = 'input window, operand 9, single buffered']
    #allocation12 [shape = 's32[1]{0}', space=sflag, size = 0x4, scoped, tag = 'scoped memory for tpu_custom_call.1']
    #allocation13 [shape = 'u8[32768]{0}', space=vmem, size = 0x8000, scoped, tag = 'input window, operand 11, single buffered']
    #allocation14 [shape = 'u8[16384]{0}', space=vmem, size = 0x4000, scoped, tag = 'output window, operand 0']
    %18 = vsyncpa [#allocation3], 0
    %s19 = scalar_lea.sflag [#allocation3], 1
    %20 = vsyncpa %s19, 0
    %21 = vsyncpa [#allocation6], 0
    %22 = vsyncpa [#allocation9], 0
    %23 = vsyncpa [#allocation12], 0
    %24 = vsyncpa [#allocation4], 0
    %s25 = scalar_lea.sflag [#allocation4], 1
    %26 = vsyncpa %s25, 0
    loop: start=0, step=1, limit=4
    $region2: #{tpu_custom_call.1} parent=1 // loop_pre_header
      _
    $region3: #{tpu_custom_call.1} parent=1 // loop_header
      %s28 = sphi 0, %s32
      %p29 = scmp.ge.s32.totalorder %s28, 4
      %s38 = sphi 0, %s40
      %s41 = sphi 0, %s38
      %s42 = sphi 0, %s41
      %s58 = sphi 0, %s42
      %s62 = sphi 0, %s62
      %s64 = sphi 0, %s62
      %s65 = sphi 0, %s64
      %s79 = sphi 0, %s65
      %s83 = sphi 0, %s83
      %s85 = sphi 0, %s83
      %s86 = sphi 0, %s85
      %s100 = sphi 0, %s86
      %s104 = sphi 0, %s104
      %s106 = sphi 0, %s104
      %s107 = sphi 0, %s106
      %s121 = sphi 0, %s107
      %s125 = sphi 0, %s125
      %s127 = sphi 0, %s125
      %s128 = sphi 0, %s127
      %s142 = sphi 0, %s128
      %s146 = sphi 0, %s146
      %s148 = sphi 0, %s146
      %s149 = sphi 0, %s148
      %s163 = sphi 0, %s149
      %s167 = sphi 0, %s167
      %s169 = sphi 0, %s167
      %s170 = sphi 0, %s169
      %s184 = sphi 0, %s170
      %s188 = sphi 0, %s188
      %s190 = sphi 0, %s188
      %s191 = sphi 0, %s190
      %s205 = sphi 0, %s191
      %s209 = sphi 0, %s209
      %s211 = sphi 0, %s209
      %s212 = sphi 0, %s211
      %s226 = sphi 0, %s212
      %s230 = sphi 0, %s230
      %s232 = sphi 0, %s230
      %s233 = sphi 0, %s232
      %s247 = sphi 0, %s233
      %s251 = sphi 0, %s251
      %s253 = sphi 0, %s251
      %s254 = sphi 0, %s253
      %s268 = sphi 0, %s254
      %s272 = sphi 0, %s272
      %s274 = sphi 0, %s272
      %s275 = sphi 0, %s274
      %s289 = sphi 0, %s275
      %s293 = sphi 0, %s293
      %s295 = sphi 0, %s293
      %s296 = sphi 0, %s295
      %s310 = sphi 0, %s296
      %s316 = sphi 0, %s318
      %s319 = sphi 0, %s316
      %s320 = sphi 0, %s319
      %s336 = sphi 0, %s320
    $region4: #{tpu_custom_call.1} parent=1 // loop_header_branch
      %31 = sbr.rel (%p29) target = $region8
    $region5: #{tpu_custom_call.1} parent=1 // loop_body
      %s33 = ssub.s32 %s28, 1
      %s34 = ssub.s32 %s28, 2
      %s35 = sadd.s32 %s28, 1
      %s36 = ssub.s32 %s28, %s35
      %p37 = scmp.eq.s32.totalorder %s36, 0
      %s39 = sadd.s32 %s38, 1
      %s40 = scalar_select %p37, %s38, %s39
      %p43 = pneg %p37
      %p44 = scmp.eq.s32.totalorder %s28, 1
      %p45 = por %p43, %p44
      %p46 = scmp.ne.s32.totalorder %s38, %s41
      %p47 = scmp.eq.s32.totalorder %s28, 0
      %p48 = por %p46, %p47
      %p49 = scmp.ne.s32.totalorder %s38, %s41
      %p50 = scmp.eq.s32.totalorder %s33, 1
      %p51 = por %p49, %p50
      %p52 = scmp.ne.s32.totalorder %s41, %s42
      %p53 = scmp.eq.s32.totalorder %s33, 0
      %p54 = por %p52, %p53
      %p55 = scmp.ne.s32.totalorder %s41, %s42
      %p56 = scmp.eq.s32.totalorder %s34, 1
      %p57 = por %p55, %p56
      %p59 = scmp.ne.s32.totalorder %s42, %s58
      %p60 = scmp.eq.s32.totalorder %s34, 0
      %p61 = por %p59, %p60
      %s63 = sadd.s32 %s62, 1
      %p66 = scmp.eq.s32.totalorder %s28, 1
      %p67 = scmp.ne.s32.totalorder %s62, %s64
      %p68 = scmp.eq.s32.totalorder %s28, 0
      %p69 = por %p67, %p68
      %p70 = scmp.ne.s32.totalorder %s62, %s64
      %p71 = scmp.eq.s32.totalorder %s33, 1
      %p72 = por %p70, %p71
      %p73 = scmp.ne.s32.totalorder %s64, %s65
      %p74 = scmp.eq.s32.totalorder %s33, 0
      %p75 = por %p73, %p74
      %p76 = scmp.ne.s32.totalorder %s64, %s65
      %p77 = scmp.eq.s32.totalorder %s34, 1
      %p78 = por %p76, %p77
      %p80 = scmp.ne.s32.totalorder %s65, %s79
      %p81 = scmp.eq.s32.totalorder %s34, 0
      %p82 = por %p80, %p81
      %s84 = sadd.s32 %s83, 1
      %p87 = scmp.eq.s32.totalorder %s28, 1
      %p88 = scmp.ne.s32.totalorder %s83, %s85
      %p89 = scmp.eq.s32.totalorder %s28, 0
      %p90 = por %p88, %p89
      %p91 = scmp.ne.s32.totalorder %s83, %s85
      %p92 = scmp.eq.s32.totalorder %s33, 1
      %p93 = por %p91, %p92
      %p94 = scmp.ne.s32.totalorder %s85, %s86
      %p95 = scmp.eq.s32.totalorder %s33, 0
      %p96 = por %p94, %p95
      %p97 = scmp.ne.s32.totalorder %s85, %s86
      %p98 = scmp.eq.s32.totalorder %s34, 1
      %p99 = por %p97, %p98
      %p101 = scmp.ne.s32.totalorder %s86, %s100
      %p102 = scmp.eq.s32.totalorder %s34, 0
      %p103 = por %p101, %p102
      %s105 = sadd.s32 %s104, 1
      %p108 = scmp.eq.s32.totalorder %s28, 1
      %p109 = scmp.ne.s32.totalorder %s104, %s106
      %p110 = scmp.eq.s32.totalorder %s28, 0
      %p111 = por %p109, %p110
      %p112 = scmp.ne.s32.totalorder %s104, %s106
      %p113 = scmp.eq.s32.totalorder %s33, 1
      %p114 = por %p112, %p113
      %p115 = scmp.ne.s32.totalorder %s106, %s107
      %p116 = scmp.eq.s32.totalorder %s33, 0
      %p117 = por %p115, %p116
      %p118 = scmp.ne.s32.totalorder %s106, %s107
      %p119 = scmp.eq.s32.totalorder %s34, 1
      %p120 = por %p118, %p119
      %p122 = scmp.ne.s32.totalorder %s107, %s121
      %p123 = scmp.eq.s32.totalorder %s34, 0
      %p124 = por %p122, %p123
      %s126 = sadd.s32 %s125, 1
      %p129 = scmp.eq.s32.totalorder %s28, 1
      %p130 = scmp.ne.s32.totalorder %s125, %s127
      %p131 = scmp.eq.s32.totalorder %s28, 0
      %p132 = por %p130, %p131
      %p133 = scmp.ne.s32.totalorder %s125, %s127
      %p134 = scmp.eq.s32.totalorder %s33, 1
      %p135 = por %p133, %p134
      %p136 = scmp.ne.s32.totalorder %s127, %s128
      %p137 = scmp.eq.s32.totalorder %s33, 0
      %p138 = por %p136, %p137
      %p139 = scmp.ne.s32.totalorder %s127, %s128
      %p140 = scmp.eq.s32.totalorder %s34, 1
      %p141 = por %p139, %p140
      %p143 = scmp.ne.s32.totalorder %s128, %s142
      %p144 = scmp.eq.s32.totalorder %s34, 0
      %p145 = por %p143, %p144
      %s147 = sadd.s32 %s146, 1
      %p150 = scmp.eq.s32.totalorder %s28, 1
      %p151 = scmp.ne.s32.totalorder %s146, %s148
      %p152 = scmp.eq.s32.totalorder %s28, 0
      %p153 = por %p151, %p152
      %p154 = scmp.ne.s32.totalorder %s146, %s148
      %p155 = scmp.eq.s32.totalorder %s33, 1
      %p156 = por %p154, %p155
      %p157 = scmp.ne.s32.totalorder %s148, %s149
      %p158 = scmp.eq.s32.totalorder %s33, 0
      %p159 = por %p157, %p158
      %p160 = scmp.ne.s32.totalorder %s148, %s149
      %p161 = scmp.eq.s32.totalorder %s34, 1
      %p162 = por %p160, %p161
      %p164 = scmp.ne.s32.totalorder %s149, %s163
      %p165 = scmp.eq.s32.totalorder %s34, 0
      %p166 = por %p164, %p165
      %s168 = sadd.s32 %s167, 1
      %p171 = scmp.eq.s32.totalorder %s28, 1
      %p172 = scmp.ne.s32.totalorder %s167, %s169
      %p173 = scmp.eq.s32.totalorder %s28, 0
      %p174 = por %p172, %p173
      %p175 = scmp.ne.s32.totalorder %s167, %s169
      %p176 = scmp.eq.s32.totalorder %s33, 1
      %p177 = por %p175, %p176
      %p178 = scmp.ne.s32.totalorder %s169, %s170
      %p179 = scmp.eq.s32.totalorder %s33, 0
      %p180 = por %p178, %p179
      %p181 = scmp.ne.s32.totalorder %s169, %s170
      %p182 = scmp.eq.s32.totalorder %s34, 1
      %p183 = por %p181, %p182
      %p185 = scmp.ne.s32.totalorder %s170, %s184
      %p186 = scmp.eq.s32.totalorder %s34, 0
      %p187 = por %p185, %p186
      %s189 = sadd.s32 %s188, 1
      %p192 = scmp.eq.s32.totalorder %s28, 1
      %p193 = scmp.ne.s32.totalorder %s188, %s190
      %p194 = scmp.eq.s32.totalorder %s28, 0
      %p195 = por %p193, %p194
      %p196 = scmp.ne.s32.totalorder %s188, %s190
      %p197 = scmp.eq.s32.totalorder %s33, 1
      %p198 = por %p196, %p197
      %p199 = scmp.ne.s32.totalorder %s190, %s191
      %p200 = scmp.eq.s32.totalorder %s33, 0
      %p201 = por %p199, %p200
      %p202 = scmp.ne.s32.totalorder %s190, %s191
      %p203 = scmp.eq.s32.totalorder %s34, 1
      %p204 = por %p202, %p203
      %p206 = scmp.ne.s32.totalorder %s191, %s205
      %p207 = scmp.eq.s32.totalorder %s34, 0
      %p208 = por %p206, %p207
      %s210 = sadd.s32 %s209, 1
      %p213 = scmp.eq.s32.totalorder %s28, 1
      %p214 = scmp.ne.s32.totalorder %s209, %s211
      %p215 = scmp.eq.s32.totalorder %s28, 0
      %p216 = por %p214, %p215
      %p217 = scmp.ne.s32.totalorder %s209, %s211
      %p218 = scmp.eq.s32.totalorder %s33, 1
      %p219 = por %p217, %p218
      %p220 = scmp.ne.s32.totalorder %s211, %s212
      %p221 = scmp.eq.s32.totalorder %s33, 0
      %p222 = por %p220, %p221
      %p223 = scmp.ne.s32.totalorder %s211, %s212
      %p224 = scmp.eq.s32.totalorder %s34, 1
      %p225 = por %p223, %p224
      %p227 = scmp.ne.s32.totalorder %s212, %s226
      %p228 = scmp.eq.s32.totalorder %s34, 0
      %p229 = por %p227, %p228
      %s231 = sadd.s32 %s230, 1
      %p234 = scmp.eq.s32.totalorder %s28, 1
      %p235 = scmp.ne.s32.totalorder %s230, %s232
      %p236 = scmp.eq.s32.totalorder %s28, 0
      %p237 = por %p235, %p236
      %p238 = scmp.ne.s32.totalorder %s230, %s232
      %p239 = scmp.eq.s32.totalorder %s33, 1
      %p240 = por %p238, %p239
      %p241 = scmp.ne.s32.totalorder %s232, %s233
      %p242 = scmp.eq.s32.totalorder %s33, 0
      %p243 = por %p241, %p242
      %p244 = scmp.ne.s32.totalorder %s232, %s233
      %p245 = scmp.eq.s32.totalorder %s34, 1
      %p246 = por %p244, %p245
      %p248 = scmp.ne.s32.totalorder %s233, %s247
      %p249 = scmp.eq.s32.totalorder %s34, 0
      %p250 = por %p248, %p249
      %s252 = sadd.s32 %s251, 1
      %p255 = scmp.eq.s32.totalorder %s28, 1
      %p256 = scmp.ne.s32.totalorder %s251, %s253
      %p257 = scmp.eq.s32.totalorder %s28, 0
      %p258 = por %p256, %p257
      %p259 = scmp.ne.s32.totalorder %s251, %s253
      %p260 = scmp.eq.s32.totalorder %s33, 1
      %p261 = por %p259, %p260
      %p262 = scmp.ne.s32.totalorder %s253, %s254
      %p263 = scmp.eq.s32.totalorder %s33, 0
      %p264 = por %p262, %p263
      %p265 = scmp.ne.s32.totalorder %s253, %s254
      %p266 = scmp.eq.s32.totalorder %s34, 1
      %p267 = por %p265, %p266
      %p269 = scmp.ne.s32.totalorder %s254, %s268
      %p270 = scmp.eq.s32.totalorder %s34, 0
      %p271 = por %p269, %p270
      %s273 = sadd.s32 %s272, 1
      %p276 = scmp.eq.s32.totalorder %s28, 1
      %p277 = scmp.ne.s32.totalorder %s272, %s274
      %p278 = scmp.eq.s32.totalorder %s28, 0
      %p279 = por %p277, %p278
      %p280 = scmp.ne.s32.totalorder %s272, %s274
      %p281 = scmp.eq.s32.totalorder %s33, 1
      %p282 = por %p280, %p281
      %p283 = scmp.ne.s32.totalorder %s274, %s275
      %p284 = scmp.eq.s32.totalorder %s33, 0
      %p285 = por %p283, %p284
      %p286 = scmp.ne.s32.totalorder %s274, %s275
      %p287 = scmp.eq.s32.totalorder %s34, 1
      %p288 = por %p286, %p287
      %p290 = scmp.ne.s32.totalorder %s275, %s289
      %p291 = scmp.eq.s32.totalorder %s34, 0
      %p292 = por %p290, %p291
      %s294 = sadd.s32 %s293, 1
      %p297 = scmp.eq.s32.totalorder %s28, 1
      %p298 = scmp.ne.s32.totalorder %s293, %s295
      %p299 = scmp.eq.s32.totalorder %s28, 0
      %p300 = por %p298, %p299
      %p301 = scmp.ne.s32.totalorder %s293, %s295
      %p302 = scmp.eq.s32.totalorder %s33, 1
      %p303 = por %p301, %p302
      %p304 = scmp.ne.s32.totalorder %s295, %s296
      %p305 = scmp.eq.s32.totalorder %s33, 0
      %p306 = por %p304, %p305
      %p307 = scmp.ne.s32.totalorder %s295, %s296
      %p308 = scmp.eq.s32.totalorder %s34, 1
      %p309 = por %p307, %p308
      %p311 = scmp.ne.s32.totalorder %s296, %s310
      %p312 = scmp.eq.s32.totalorder %s34, 0
      %p313 = por %p311, %p312
      %s314 = ssub.s32 %s28, %s35
      %p315 = scmp.eq.s32.totalorder %s314, 0
      %s317 = sadd.s32 %s316, 1
      %s318 = scalar_select %p315, %s316, %s317
      %p321 = pneg %p315
      %p322 = scmp.eq.s32.totalorder %s28, 1
      %p323 = por %p321, %p322
      %p324 = scmp.ne.s32.totalorder %s316, %s319
      %p325 = scmp.eq.s32.totalorder %s28, 0
      %p326 = por %p324, %p325
      %p327 = scmp.ne.s32.totalorder %s316, %s319
      %p328 = scmp.eq.s32.totalorder %s33, 1
      %p329 = por %p327, %p328
      %p330 = scmp.ne.s32.totalorder %s319, %s320
      %p331 = scmp.eq.s32.totalorder %s33, 0
      %p332 = por %p330, %p331
      %p333 = scmp.ne.s32.totalorder %s319, %s320
      %p334 = scmp.eq.s32.totalorder %s34, 1
      %p335 = por %p333, %p334
      %p337 = scmp.ne.s32.totalorder %s320, %s336
      %p338 = scmp.eq.s32.totalorder %s34, 0
      %p339 = por %p337, %p338
      %p340 = scmp.le.s32.totalorder 1, %s28
      %p341 = scmp.lt.s32.totalorder %s28, 3
      %p342 = pnand %p340, %p341
      %p343 = pneg %p342
      // Predicated region
      $region9: #{tpu_custom_call.1} parent=5 // pred_check
        _
      $region10: #{tpu_custom_call.1} parent=5 // pred_check_branch
        %345 = sbr.rel (%p342) target = $region12
      $region11: #{tpu_custom_call.1} parent=5 // pred_region
        %s346 = ssub.s32 %s28, 1
        // Predicated region
        $region13: #{tpu_custom_call.1} parent=11 // pred_check
          %p347 = pneg %p75
        $region14: #{tpu_custom_call.1} parent=11 // pred_check_branch
          %349 = sbr.rel (%p347) target = $region16
        $region15: #{tpu_custom_call.1} parent=11 // pred_region
          %s351 = ssub.s32 1024, 1024
          %352 = vsyncadd [#allocation6], %s351
          %s353 = sshll.u32 [#allocation5], 4
          %s354 = int_to_ptr.vmem [resolvable:$true] %s353
          %359 = dma.hbm_to_vmem [thread:$0]  %s1, 1024, %s354, [#allocation6], 64, 64, 4
        $region16: #{tpu_custom_call.1} parent=11 // pred_fallthru
          _
        // Predicated region
        $region17: #{tpu_custom_call.1} parent=11 // pred_check
          %p360 = pneg %p96
        $region18: #{tpu_custom_call.1} parent=11 // pred_check_branch
          %362 = sbr.rel (%p360) target = $region20
        $region19: #{tpu_custom_call.1} parent=11 // pred_region
          _
        $region20: #{tpu_custom_call.1} parent=11 // pred_fallthru
          _
        // Predicated region
        $region21: #{tpu_custom_call.1} parent=11 // pred_check
          %p363 = pneg %p117
        $region22: #{tpu_custom_call.1} parent=11 // pred_check_branch
          %365 = sbr.rel (%p363) target = $region24
        $region23: #{tpu_custom_call.1} parent=11 // pred_region
          %s367 = ssub.s32 1024, 1024
          %368 = vsyncadd [#allocation6], %s367
          %s369 = sshll.u32 [#allocation7], 4
          %s370 = int_to_ptr.vmem [resolvable:$true] %s369
          %375 = dma.hbm_to_vmem [thread:$0]  %s3, 1024, %s370, [#allocation6], 64, 64, 4
        $region24: #{tpu_custom_call.1} parent=11 // pred_fallthru
          _
        // Predicated region
        $region25: #{tpu_custom_call.1} parent=11 // pred_check
          %p376 = pneg %p138
        $region26: #{tpu_custom_call.1} parent=11 // pred_check_branch
          %378 = sbr.rel (%p376) target = $region28
        $region27: #{tpu_custom_call.1} parent=11 // pred_region
          _
        $region28: #{tpu_custom_call.1} parent=11 // pred_fallthru
          _
        // Predicated region
        $region29: #{tpu_custom_call.1} parent=11 // pred_check
          %p379 = pneg %p159
        $region30: #{tpu_custom_call.1} parent=11 // pred_check_branch
          %381 = sbr.rel (%p379) target = $region32
        $region31: #{tpu_custom_call.1} parent=11 // pred_region
          %s383 = ssub.s32 1024, 1024
          %384 = vsyncadd [#allocation9], %s383
          %s385 = sshll.u32 [#allocation8], 4
          %s386 = int_to_ptr.vmem [resolvable:$true] %s385
          %391 = dma.hbm_to_vmem [thread:$0]  %s5, 1024, %s386, [#allocation9], 64, 64, 4
        $region32: #{tpu_custom_call.1} parent=11 // pred_fallthru
          _
        // Predicated region
        $region33: #{tpu_custom_call.1} parent=11 // pred_check
          %p392 = pneg %p180
        $region34: #{tpu_custom_call.1} parent=11 // pred_check_branch
          %394 = sbr.rel (%p392) target = $region36
        $region35: #{tpu_custom_call.1} parent=11 // pred_region
          _
        $region36: #{tpu_custom_call.1} parent=11 // pred_fallthru
          _
        // Predicated region
        $region37: #{tpu_custom_call.1} parent=11 // pred_check
          %p395 = pneg %p201
        $region38: #{tpu_custom_call.1} parent=11 // pred_check_branch
          %397 = sbr.rel (%p395) target = $region40
        $region39: #{tpu_custom_call.1} parent=11 // pred_region
          %s399 = ssub.s32 1024, 1024
          %400 = vsyncadd [#allocation9], %s399
          %s401 = sshll.u32 [#allocation10], 4
          %s402 = int_to_ptr.vmem [resolvable:$true] %s401
          %407 = dma.hbm_to_vmem [thread:$0]  %s7, 1024, %s402, [#allocation9], 64, 64, 4
        $region40: #{tpu_custom_call.1} parent=11 // pred_fallthru
          _
        // Predicated region
        $region41: #{tpu_custom_call.1} parent=11 // pred_check
          %p408 = pneg %p222
        $region42: #{tpu_custom_call.1} parent=11 // pred_check_branch
          %410 = sbr.rel (%p408) target = $region44
        $region43: #{tpu_custom_call.1} parent=11 // pred_region
          _
        $region44: #{tpu_custom_call.1} parent=11 // pred_fallthru
          _
        // Predicated region
        $region45: #{tpu_custom_call.1} parent=11 // pred_check
          %p411 = pneg %p243
        $region46: #{tpu_custom_call.1} parent=11 // pred_check_branch
          %413 = sbr.rel (%p411) target = $region48
        $region47: #{tpu_custom_call.1} parent=11 // pred_region
          %s415 = ssub.s32 1024, 1024
          %416 = vsyncadd [#allocation12], %s415
          %s417 = sshll.u32 [#allocation11], 4
          %s418 = int_to_ptr.vmem [resolvable:$true] %s417
          %423 = dma.hbm_to_vmem [thread:$0]  %s9, 1024, %s418, [#allocation12], 64, 64, 4
        $region48: #{tpu_custom_call.1} parent=11 // pred_fallthru
          _
        // Predicated region
        $region49: #{tpu_custom_call.1} parent=11 // pred_check
          %p424 = pneg %p264
        $region50: #{tpu_custom_call.1} parent=11 // pred_check_branch
          %426 = sbr.rel (%p424) target = $region52
        $region51: #{tpu_custom_call.1} parent=11 // pred_region
          _
        $region52: #{tpu_custom_call.1} parent=11 // pred_fallthru
          _
        // Predicated region
        $region53: #{tpu_custom_call.1} parent=11 // pred_check
          %p427 = pneg %p285
        $region54: #{tpu_custom_call.1} parent=11 // pred_check_branch
          %429 = sbr.rel (%p427) target = $region56
        $region55: #{tpu_custom_call.1} parent=11 // pred_region
          %s431 = ssub.s32 1024, 1024
          %432 = vsyncadd [#allocation12], %s431
          %s433 = sshll.u32 [#allocation13], 4
          %s434 = int_to_ptr.vmem [resolvable:$true] %s433
          %439 = dma.hbm_to_vmem [thread:$0]  %s11, 1024, %s434, [#allocation12], 64, 64, 4
        $region56: #{tpu_custom_call.1} parent=11 // pred_fallthru
          _
        // Predicated region
        $region57: #{tpu_custom_call.1} parent=11 // pred_check
          %p440 = pneg %p306
        $region58: #{tpu_custom_call.1} parent=11 // pred_check_branch
          %442 = sbr.rel (%p440) target = $region60
        $region59: #{tpu_custom_call.1} parent=11 // pred_region
          _
        $region60: #{tpu_custom_call.1} parent=11 // pred_fallthru
          _
      $region12: #{tpu_custom_call.1} parent=5 // pred_fallthru
        _
      %p443 = scmp.lt.s32.totalorder %s28, 2
      // Predicated region
      $region61: #{tpu_custom_call.1} parent=5 // pred_check
        %p444 = pneg %p443
      $region62: #{tpu_custom_call.1} parent=5 // pred_check_branch
        %446 = sbr.rel (%p444) target = $region64
      $region63: #{tpu_custom_call.1} parent=5 // pred_region
        // Predicated region
        $region65: #{tpu_custom_call.1} parent=63 // pred_check
          %p447 = pneg %p48
        $region66: #{tpu_custom_call.1} parent=63 // pred_check_branch
          %449 = sbr.rel (%p447) target = $region68
        $region67: #{tpu_custom_call.1} parent=63 // pred_region
          %s450 = sand.u32 %s38, 1
          %s451 = scalar_lea.sflag [#allocation3], %s450
          %s452 = sand.u32 %s38, 1
          %s453 = smul.addr %s452, 8
          %s454 = scalar_lea.vmem [#allocation2], %s453
          %s455 = smul.u32 2, %s28
          %s457 = ssub.s32 128, 128
          %458 = vsyncadd %s451, %s457
          %s459 = smul.addr %s455, 64
          %s460 = scalar_lea.hbm %s0, %s459
          %s461 = sshll.u32 %s454, 4
          %s462 = int_to_ptr.vmem [resolvable:$true] %s461
          %467 = dma.hbm_to_vmem [thread:$0]  %s460, 128, %s462, %s451, 64, 64, 4
        $region68: #{tpu_custom_call.1} parent=63 // pred_fallthru
          _
      $region64: #{tpu_custom_call.1} parent=5 // pred_fallthru
        _
      %p468 = scmp.le.s32.totalorder 1, %s28
      %p469 = scmp.lt.s32.totalorder %s28, 3
      %p470 = pnand %p468, %p469
      %p471 = pneg %p470
      // Predicated region
      $region69: #{tpu_custom_call.1} parent=5 // pred_check
        _
      $region70: #{tpu_custom_call.1} parent=5 // pred_check_branch
        %473 = sbr.rel (%p470) target = $region72
      $region71: #{tpu_custom_call.1} parent=5 // pred_region
        %s474 = ssub.s32 %s28, 1
        %s475 = sand.u32 %s41, 1
        %s476 = scalar_lea.sflag [#allocation3], %s475
        %s477 = sand.u32 %s41, 1
        %s478 = smul.addr %s477, 8
        %s479 = scalar_lea.vmem [#allocation2], %s478
        // Predicated region
        $region73: #{tpu_custom_call.1} parent=71 // pred_check
          %p480 = pneg %p54
        $region74: #{tpu_custom_call.1} parent=71 // pred_check_branch
          %482 = sbr.rel (%p480) target = $region76
        $region75: #{tpu_custom_call.1} parent=71 // pred_region
          %483 = dma.done %s476, 128
        $region76: #{tpu_custom_call.1} parent=71 // pred_fallthru
          _
        // Predicated region
        $region77: #{tpu_custom_call.1} parent=71 // pred_check
          %p484 = pneg %p75
        $region78: #{tpu_custom_call.1} parent=71 // pred_check_branch
          %486 = sbr.rel (%p484) target = $region80
        $region79: #{tpu_custom_call.1} parent=71 // pred_region
          %487 = dma.done [#allocation6], 1024
        $region80: #{tpu_custom_call.1} parent=71 // pred_fallthru
          _
        // Predicated region
        $region81: #{tpu_custom_call.1} parent=71 // pred_check
          %p488 = pneg %p117
        $region82: #{tpu_custom_call.1} parent=71 // pred_check_branch
          %490 = sbr.rel (%p488) target = $region84
        $region83: #{tpu_custom_call.1} parent=71 // pred_region
          %491 = dma.done [#allocation6], 1024
        $region84: #{tpu_custom_call.1} parent=71 // pred_fallthru
          _
        // Predicated region
        $region85: #{tpu_custom_call.1} parent=71 // pred_check
          %p492 = pneg %p159
        $region86: #{tpu_custom_call.1} parent=71 // pred_check_branch
          %494 = sbr.rel (%p492) target = $region88
        $region87: #{tpu_custom_call.1} parent=71 // pred_region
          %495 = dma.done [#allocation9], 1024
        $region88: #{tpu_custom_call.1} parent=71 // pred_fallthru
          _
        // Predicated region
        $region89: #{tpu_custom_call.1} parent=71 // pred_check
          %p496 = pneg %p201
        $region90: #{tpu_custom_call.1} parent=71 // pred_check_branch
          %498 = sbr.rel (%p496) target = $region92
        $region91: #{tpu_custom_call.1} parent=71 // pred_region
          %499 = dma.done [#allocation9], 1024
        $region92: #{tpu_custom_call.1} parent=71 // pred_fallthru
          _
        // Predicated region
        $region93: #{tpu_custom_call.1} parent=71 // pred_check
          %p500 = pneg %p243
        $region94: #{tpu_custom_call.1} parent=71 // pred_check_branch
          %502 = sbr.rel (%p500) target = $region96
        $region95: #{tpu_custom_call.1} parent=71 // pred_region
          %503 = dma.done [#allocation12], 1024
        $region96: #{tpu_custom_call.1} parent=71 // pred_fallthru
          _
        // Predicated region
        $region97: #{tpu_custom_call.1} parent=71 // pred_check
          %p504 = pneg %p285
        $region98: #{tpu_custom_call.1} parent=71 // pred_check_branch
          %506 = sbr.rel (%p504) target = $region100
        $region99: #{tpu_custom_call.1} parent=71 // pred_region
          %507 = dma.done [#allocation12], 1024
        $region100: #{tpu_custom_call.1} parent=71 // pred_fallthru
          _
        %s508 = sand.u32 %s41, 1
        %s509 = scalar_lea.sflag [#allocation3], %s508
        %s510 = sand.u32 %s41, 1
        %s511 = smul.addr %s510, 8
        %s512 = scalar_lea.vmem [#allocation2], %s511
        %p513 = pneg %p54
        %p514 = pneg %p51
        %p515 = pneg %p75
        %p516 = pneg %p72
        %p517 = pneg %p96
        %p518 = pneg %p93
        %p519 = pneg %p117
        %p520 = pneg %p114
        %p521 = pneg %p138
        %p522 = pneg %p135
        %p523 = pneg %p159
        %p524 = pneg %p156
        %p525 = pneg %p180
        %p526 = pneg %p177
        %p527 = pneg %p201
        %p528 = pneg %p198
        %p529 = pneg %p222
        %p530 = pneg %p219
        %p531 = pneg %p243
        %p532 = pneg %p240
        %p533 = pneg %p264
        %p534 = pneg %p261
        %p535 = pneg %p285
        %p536 = pneg %p282
        %p537 = pneg %p306
        %p538 = pneg %p303
        %p539 = pneg %p332
        %p540 = pneg %p329
        %s541 = sand.u32 %s319, 1
        %s542 = scalar_lea.sflag [#allocation4], %s541
        %s543 = sand.u32 %s319, 1
        %s544 = smul.addr %s543, 16
        %s545 = scalar_lea.vmem [#allocation14], %s544
        %s546 = smul.u32 2, %s33
        %s547 = smul.u32 2, %s33
        %v549 = vld [vmem:[%s479] sm:$0xf]
        %v550 = vld [vmem:[%s479 + $0x4] sm:$0xf]
        %v551 = vld [vmem:[#allocation5] sm:$0xf]
        %v552 = vld [vmem:[#allocation5 + $0x4] sm:$0xf]
        %v553 = vld [vmem:[#allocation5 + $0x8] sm:$0xf]
        %v554 = vld [vmem:[#allocation5 + $0xc] sm:$0xf]
        %v555 = vld [vmem:[#allocation5 + $0x10] sm:$0xf]
        %v556 = vld [vmem:[#allocation5 + $0x14] sm:$0xf]
        %v557 = vld [vmem:[#allocation5 + $0x18] sm:$0xf]
        %v558 = vld [vmem:[#allocation5 + $0x1c] sm:$0xf]
        %v559 = vld [vmem:[#allocation5 + $0x20] sm:$0xf]
        %v560 = vld [vmem:[#allocation5 + $0x24] sm:$0xf]
        %v561 = vld [vmem:[#allocation5 + $0x28] sm:$0xf]
        %v562 = vld [vmem:[#allocation5 + $0x2c] sm:$0xf]
        %v563 = vld [vmem:[#allocation5 + $0x30] sm:$0xf]
        %v564 = vld [vmem:[#allocation5 + $0x34] sm:$0xf]
        %v565 = vld [vmem:[#allocation5 + $0x38] sm:$0xf]
        %v566 = vld [vmem:[#allocation5 + $0x3c] sm:$0xf]
        %v567 = vld [vmem:[%s2] sm:$0x1]
        %v569 = vlaneseq
        %v570 = vshrl.u32 %v569, 7
        %v571 = vsub.s32 0, %v570
        %v572 = vrot.slane %v567, %v571
        %v576 = vunpack.c.l.b16 %v549
        %v577 = vunpack.c.l.b16 %v550
        %v578 = vpack.c.b16 %v577, %v576
        %v596 = vunpack.c.l.b16 %v551
        %v597 = vunpack.c.l.b16 %v552
        %v598 = vunpack.c.l.b16 %v553
        %v599 = vunpack.c.l.b16 %v554
        %v600 = vunpack.c.l.b16 %v555
        %v601 = vunpack.c.l.b16 %v556
        %v602 = vunpack.c.l.b16 %v557
        %v603 = vunpack.c.l.b16 %v558
        %v604 = vunpack.c.l.b16 %v559
        %v605 = vunpack.c.l.b16 %v560
        %v606 = vunpack.c.l.b16 %v561
        %v607 = vunpack.c.l.b16 %v562
        %v608 = vunpack.c.l.b16 %v563
        %v609 = vunpack.c.l.b16 %v564
        %v610 = vunpack.c.l.b16 %v565
        %v611 = vunpack.c.l.b16 %v566
        %v612 = vpack.c.b16 %v597, %v596
        %v613 = vpack.c.b16 %v599, %v598
        %v614 = vpack.c.b16 %v601, %v600
        %v615 = vpack.c.b16 %v603, %v602
        %v616 = vpack.c.b16 %v605, %v604
        %v617 = vpack.c.b16 %v607, %v606
        %v618 = vpack.c.b16 %v609, %v608
        %v619 = vpack.c.b16 %v611, %v610
        %628 = vmatprep.subr.bf16.mxu0 0
        %629 = vmatpush1.bf16.msra.mxu0 %v612
        %630 = vmatprep.subr.bf16.mxu0 0
        %631 = vmatpush1.bf16.msra.mxu0 %v613
        %632 = vmatprep.subr.bf16.mxu0 0
        %633 = vmatpush1.bf16.msra.mxu0 %v614
        %634 = vmatprep.subr.bf16.mxu0 0
        %635 = vmatpush1.bf16.msra.mxu0 %v615
        %636 = vmatprep.subr.bf16.mxu0 0
        %637 = vmatpush1.bf16.msra.mxu0 %v616
        %638 = vmatprep.subr.bf16.mxu0 0
        %639 = vmatpush1.bf16.msra.mxu0 %v617
        %640 = vmatprep.subr.bf16.mxu0 0
        %641 = vmatpush1.bf16.msra.mxu0 %v618
        %642 = vmatprep.subr.bf16.mxu0 0
        %643 = vmatpush1.bf16.msra.mxu0 %v619
        %644 = vmatprep.subr.bf16.mxu0 0
        %645 = vmatpush1.bf16.msra.mxu0 0
        %646 = vmatprep.subr.bf16.mxu0 0
        %647 = vmatpush1.bf16.msra.mxu0 0
        %648 = vmatprep.subr.bf16.mxu0 0
        %649 = vmatpush1.bf16.msra.mxu0 0
        %650 = vmatprep.subr.bf16.mxu0 0
        %651 = vmatpush1.bf16.msra.mxu0 0
        %652 = vmatprep.subr.bf16.mxu0 0
        %653 = vmatpush1.bf16.msra.mxu0 0
        %654 = vmatprep.subr.bf16.mxu0 0
        %655 = vmatpush1.bf16.msra.mxu0 0
        %656 = vmatprep.subr.bf16.mxu0 0
        %657 = vmatpush1.bf16.msra.mxu0 0
        %658 = vmatprep.subr.bf16.mxu0 0
        %659 = vmatpush1.bf16.msra.mxu0 0
        %660 = vmatprep.mubr.bf16.mxu0 0
        %661 = vmatmul.mubr.bf16.gmra.mrb[0].mxu0 %v578
        %v662 = vpop.f32.mrb[0].mxu0
        %v663 = vadd.f32 %v572, %v662
        %v664 = vpop.f32.mrb[0].mxu0
        %v665 = vpop.f32.mrb[0].mxu0
        %v666 = vadd.f32 %v572, %v665
        %v667 = vpop.f32.mrb[0].mxu0
        %668 = vdwg.mxu0
        %v669 = vpack.c.bf16 %v666, %v663
        %v670 = vld [vmem:[#allocation7] sm:$0xf]
        %v671 = vld [vmem:[#allocation7 + $0x4] sm:$0xf]
        %v672 = vld [vmem:[#allocation7 + $0x8] sm:$0xf]
        %v673 = vld [vmem:[#allocation7 + $0xc] sm:$0xf]
        %v674 = vld [vmem:[#allocation7 + $0x10] sm:$0xf]
        %v675 = vld [vmem:[#allocation7 + $0x14] sm:$0xf]
        %v676 = vld [vmem:[#allocation7 + $0x18] sm:$0xf]
        %v677 = vld [vmem:[#allocation7 + $0x1c] sm:$0xf]
        %v678 = vld [vmem:[#allocation7 + $0x20] sm:$0xf]
        %v679 = vld [vmem:[#allocation7 + $0x24] sm:$0xf]
        %v680 = vld [vmem:[#allocation7 + $0x28] sm:$0xf]
        %v681 = vld [vmem:[#allocation7 + $0x2c] sm:$0xf]
        %v682 = vld [vmem:[#allocation7 + $0x30] sm:$0xf]
        %v683 = vld [vmem:[#allocation7 + $0x34] sm:$0xf]
        %v684 = vld [vmem:[#allocation7 + $0x38] sm:$0xf]
        %v685 = vld [vmem:[#allocation7 + $0x3c] sm:$0xf]
        %v686 = vld [vmem:[%s4] sm:$0x1]
        %v688 = vlaneseq
        %v689 = vshrl.u32 %v688, 7
        %v690 = vsub.s32 0, %v689
        %v691 = vrot.slane %v686, %v690
        %v709 = vunpack.c.l.b16 %v670
        %v710 = vunpack.c.l.b16 %v671
        %v711 = vunpack.c.l.b16 %v672
        %v712 = vunpack.c.l.b16 %v673
        %v713 = vunpack.c.l.b16 %v674
        %v714 = vunpack.c.l.b16 %v675
        %v715 = vunpack.c.l.b16 %v676
        %v716 = vunpack.c.l.b16 %v677
        %v717 = vunpack.c.l.b16 %v678
        %v718 = vunpack.c.l.b16 %v679
        %v719 = vunpack.c.l.b16 %v680
        %v720 = vunpack.c.l.b16 %v681
        %v721 = vunpack.c.l.b16 %v682
        %v722 = vunpack.c.l.b16 %v683
        %v723 = vunpack.c.l.b16 %v684
        %v724 = vunpack.c.l.b16 %v685
        %v725 = vpack.c.b16 %v710, %v709
        %v726 = vpack.c.b16 %v712, %v711
        %v727 = vpack.c.b16 %v714, %v713
        %v728 = vpack.c.b16 %v716, %v715
        %v729 = vpack.c.b16 %v718, %v717
        %v730 = vpack.c.b16 %v720, %v719
        %v731 = vpack.c.b16 %v722, %v721
        %v732 = vpack.c.b16 %v724, %v723
        %741 = vmatprep.subr.bf16.mxu0 0
        %742 = vmatpush1.bf16.msra.mxu0 %v725
        %743 = vmatprep.subr.bf16.mxu0 0
        %744 = vmatpush1.bf16.msra.mxu0 %v726
        %745 = vmatprep.subr.bf16.mxu0 0
        %746 = vmatpush1.bf16.msra.mxu0 %v727
        %747 = vmatprep.subr.bf16.mxu0 0
        %748 = vmatpush1.bf16.msra.mxu0 %v728
        %749 = vmatprep.subr.bf16.mxu0 0
        %750 = vmatpush1.bf16.msra.mxu0 %v729
        %751 = vmatprep.subr.bf16.mxu0 0
        %752 = vmatpush1.bf16.msra.mxu0 %v730
        %753 = vmatprep.subr.bf16.mxu0 0
        %754 = vmatpush1.bf16.msra.mxu0 %v731
        %755 = vmatprep.subr.bf16.mxu0 0
        %756 = vmatpush1.bf16.msra.mxu0 %v732
        %757 = vmatprep.subr.bf16.mxu0 0
        %758 = vmatpush1.bf16.msra.mxu0 0
        %759 = vmatprep.subr.bf16.mxu0 0
        %760 = vmatpush1.bf16.msra.mxu0 0
        %761 = vmatprep.subr.bf16.mxu0 0
        %762 = vmatpush1.bf16.msra.mxu0 0
        %763 = vmatprep.subr.bf16.mxu0 0
        %764 = vmatpush1.bf16.msra.mxu0 0
        %765 = vmatprep.subr.bf16.mxu0 0
        %766 = vmatpush1.bf16.msra.mxu0 0
        %767 = vmatprep.subr.bf16.mxu0 0
        %768 = vmatpush1.bf16.msra.mxu0 0
        %769 = vmatprep.subr.bf16.mxu0 0
        %770 = vmatpush1.bf16.msra.mxu0 0
        %771 = vmatprep.subr.bf16.mxu0 0
        %772 = vmatpush1.bf16.msra.mxu0 0
        %773 = vmatprep.mubr.bf16.mxu0 0
        %774 = vmatmul.mubr.bf16.gmra.mrb[0].mxu0 %v669
        %v775 = vpop.f32.mrb[0].mxu0
        %v776 = vadd.f32 %v691, %v775
        %v777 = vpop.f32.mrb[0].mxu0
        %v778 = vpop.f32.mrb[0].mxu0
        %v779 = vadd.f32 %v691, %v778
        %v780 = vpop.f32.mrb[0].mxu0
        %781 = vdwg.mxu0
        %v782 = vmax.f32 %v776, 0.0
        %v783 = vmax.f32 %v779, 0.0
        %v784 = vpack.c.bf16 %v783, %v782
        %v785 = vld [vmem:[#allocation8] sm:$0xf]
        %v786 = vld [vmem:[#allocation8 + $0x4] sm:$0xf]
        %v787 = vld [vmem:[#allocation8 + $0x8] sm:$0xf]
        %v788 = vld [vmem:[#allocation8 + $0xc] sm:$0xf]
        %v789 = vld [vmem:[#allocation8 + $0x10] sm:$0xf]
        %v790 = vld [vmem:[#allocation8 + $0x14] sm:$0xf]
        %v791 = vld [vmem:[#allocation8 + $0x18] sm:$0xf]
        %v792 = vld [vmem:[#allocation8 + $0x1c] sm:$0xf]
        %v793 = vld [vmem:[#allocation8 + $0x20] sm:$0xf]
        %v794 = vld [vmem:[#allocation8 + $0x24] sm:$0xf]
        %v795 = vld [vmem:[#allocation8 + $0x28] sm:$0xf]
        %v796 = vld [vmem:[#allocation8 + $0x2c] sm:$0xf]
        %v797 = vld [vmem:[#allocation8 + $0x30] sm:$0xf]
        %v798 = vld [vmem:[#allocation8 + $0x34] sm:$0xf]
        %v799 = vld [vmem:[#allocation8 + $0x38] sm:$0xf]
        %v800 = vld [vmem:[#allocation8 + $0x3c] sm:$0xf]
        %v801 = vld [vmem:[%s6] sm:$0x1]
        %v803 = vlaneseq
        %v804 = vshrl.u32 %v803, 7
        %v805 = vsub.s32 0, %v804
        %v806 = vrot.slane %v801, %v805
        %v824 = vunpack.c.l.b16 %v785
        %v825 = vunpack.c.l.b16 %v786
        %v826 = vunpack.c.l.b16 %v787
        %v827 = vunpack.c.l.b16 %v788
        %v828 = vunpack.c.l.b16 %v789
        %v829 = vunpack.c.l.b16 %v790
        %v830 = vunpack.c.l.b16 %v791
        %v831 = vunpack.c.l.b16 %v792
        %v832 = vunpack.c.l.b16 %v793
        %v833 = vunpack.c.l.b16 %v794
        %v834 = vunpack.c.l.b16 %v795
        %v835 = vunpack.c.l.b16 %v796
        %v836 = vunpack.c.l.b16 %v797
        %v837 = vunpack.c.l.b16 %v798
        %v838 = vunpack.c.l.b16 %v799
        %v839 = vunpack.c.l.b16 %v800
        %v840 = vpack.c.b16 %v825, %v824
        %v841 = vpack.c.b16 %v827, %v826
        %v842 = vpack.c.b16 %v829, %v828
        %v843 = vpack.c.b16 %v831, %v830
        %v844 = vpack.c.b16 %v833, %v832
        %v845 = vpack.c.b16 %v835, %v834
        %v846 = vpack.c.b16 %v837, %v836
        %v847 = vpack.c.b16 %v839, %v838
        %856 = vmatprep.subr.bf16.mxu0 0
        %857 = vmatpush1.bf16.msra.mxu0 %v840
        %858 = vmatprep.subr.bf16.mxu0 0
        %859 = vmatpush1.bf16.msra.mxu0 %v841
        %860 = vmatprep.subr.bf16.mxu0 0
        %861 = vmatpush1.bf16.msra.mxu0 %v842
        %862 = vmatprep.subr.bf16.mxu0 0
        %863 = vmatpush1.bf16.msra.mxu0 %v843
        %864 = vmatprep.subr.bf16.mxu0 0
        %865 = vmatpush1.bf16.msra.mxu0 %v844
        %866 = vmatprep.subr.bf16.mxu0 0
        %867 = vmatpush1.bf16.msra.mxu0 %v845
        %868 = vmatprep.subr.bf16.mxu0 0
        %869 = vmatpush1.bf16.msra.mxu0 %v846
        %870 = vmatprep.subr.bf16.mxu0 0
        %871 = vmatpush1.bf16.msra.mxu0 %v847
        %872 = vmatprep.subr.bf16.mxu0 0
        %873 = vmatpush1.bf16.msra.mxu0 0
        %874 = vmatprep.subr.bf16.mxu0 0
        %875 = vmatpush1.bf16.msra.mxu0 0
        %876 = vmatprep.subr.bf16.mxu0 0
        %877 = vmatpush1.bf16.msra.mxu0 0
        %878 = vmatprep.subr.bf16.mxu0 0
        %879 = vmatpush1.bf16.msra.mxu0 0
        %880 = vmatprep.subr.bf16.mxu0 0
        %881 = vmatpush1.bf16.msra.mxu0 0
        %882 = vmatprep.subr.bf16.mxu0 0
        %883 = vmatpush1.bf16.msra.mxu0 0
        %884 = vmatprep.subr.bf16.mxu0 0
        %885 = vmatpush1.bf16.msra.mxu0 0
        %886 = vmatprep.subr.bf16.mxu0 0
        %887 = vmatpush1.bf16.msra.mxu0 0
        %888 = vmatprep.mubr.bf16.mxu0 0
        %889 = vmatmul.mubr.bf16.gmra.mrb[0].mxu0 %v784
        %v890 = vpop.f32.mrb[0].mxu0
        %v891 = vadd.f32 %v806, %v890
        %v892 = vpop.f32.mrb[0].mxu0
        %v893 = vpop.f32.mrb[0].mxu0
        %v894 = vadd.f32 %v806, %v893
        %v895 = vpop.f32.mrb[0].mxu0
        %896 = vdwg.mxu0
        %v897 = vpack.c.bf16 %v894, %v891
        %v898 = vld [vmem:[#allocation10] sm:$0xf]
        %v899 = vld [vmem:[#allocation10 + $0x4] sm:$0xf]
        %v900 = vld [vmem:[#allocation10 + $0x8] sm:$0xf]
        %v901 = vld [vmem:[#allocation10 + $0xc] sm:$0xf]
        %v902 = vld [vmem:[#allocation10 + $0x10] sm:$0xf]
        %v903 = vld [vmem:[#allocation10 + $0x14] sm:$0xf]
        %v904 = vld [vmem:[#allocation10 + $0x18] sm:$0xf]
        %v905 = vld [vmem:[#allocation10 + $0x1c] sm:$0xf]
        %v906 = vld [vmem:[#allocation10 + $0x20] sm:$0xf]
        %v907 = vld [vmem:[#allocation10 + $0x24] sm:$0xf]
        %v908 = vld [vmem:[#allocation10 + $0x28] sm:$0xf]
        %v909 = vld [vmem:[#allocation10 + $0x2c] sm:$0xf]
        %v910 = vld [vmem:[#allocation10 + $0x30] sm:$0xf]
        %v911 = vld [vmem:[#allocation10 + $0x34] sm:$0xf]
        %v912 = vld [vmem:[#allocation10 + $0x38] sm:$0xf]
        %v913 = vld [vmem:[#allocation10 + $0x3c] sm:$0xf]
        %v914 = vld [vmem:[%s8] sm:$0x1]
        %v916 = vlaneseq
        %v917 = vshrl.u32 %v916, 7
        %v918 = vsub.s32 0, %v917
        %v919 = vrot.slane %v914, %v918
        %v937 = vunpack.c.l.b16 %v898
        %v938 = vunpack.c.l.b16 %v899
        %v939 = vunpack.c.l.b16 %v900
        %v940 = vunpack.c.l.b16 %v901
        %v941 = vunpack.c.l.b16 %v902
        %v942 = vunpack.c.l.b16 %v903
        %v943 = vunpack.c.l.b16 %v904
        %v944 = vunpack.c.l.b16 %v905
        %v945 = vunpack.c.l.b16 %v906
        %v946 = vunpack.c.l.b16 %v907
        %v947 = vunpack.c.l.b16 %v908
        %v948 = vunpack.c.l.b16 %v909
        %v949 = vunpack.c.l.b16 %v910
        %v950 = vunpack.c.l.b16 %v911
        %v951 = vunpack.c.l.b16 %v912
        %v952 = vunpack.c.l.b16 %v913
        %v953 = vpack.c.b16 %v938, %v937
        %v954 = vpack.c.b16 %v940, %v939
        %v955 = vpack.c.b16 %v942, %v941
        %v956 = vpack.c.b16 %v944, %v943
        %v957 = vpack.c.b16 %v946, %v945
        %v958 = vpack.c.b16 %v948, %v947
        %v959 = vpack.c.b16 %v950, %v949
        %v960 = vpack.c.b16 %v952, %v951
        %969 = vmatprep.subr.bf16.mxu0 0
        %970 = vmatpush1.bf16.msra.mxu0 %v953
        %971 = vmatprep.subr.bf16.mxu0 0
        %972 = vmatpush1.bf16.msra.mxu0 %v954
        %973 = vmatprep.subr.bf16.mxu0 0
        %974 = vmatpush1.bf16.msra.mxu0 %v955
        %975 = vmatprep.subr.bf16.mxu0 0
        %976 = vmatpush1.bf16.msra.mxu0 %v956
        %977 = vmatprep.subr.bf16.mxu0 0
        %978 = vmatpush1.bf16.msra.mxu0 %v957
        %979 = vmatprep.subr.bf16.mxu0 0
        %980 = vmatpush1.bf16.msra.mxu0 %v958
        %981 = vmatprep.subr.bf16.mxu0 0
        %982 = vmatpush1.bf16.msra.mxu0 %v959
        %983 = vmatprep.subr.bf16.mxu0 0
        %984 = vmatpush1.bf16.msra.mxu0 %v960
        %985 = vmatprep.subr.bf16.mxu0 0
        %986 = vmatpush1.bf16.msra.mxu0 0
        %987 = vmatprep.subr.bf16.mxu0 0
        %988 = vmatpush1.bf16.msra.mxu0 0
        %989 = vmatprep.subr.bf16.mxu0 0
        %990 = vmatpush1.bf16.msra.mxu0 0
        %991 = vmatprep.subr.bf16.mxu0 0
        %992 = vmatpush1.bf16.msra.mxu0 0
        %993 = vmatprep.subr.bf16.mxu0 0
        %994 = vmatpush1.bf16.msra.mxu0 0
        %995 = vmatprep.subr.bf16.mxu0 0
        %996 = vmatpush1.bf16.msra.mxu0 0
        %997 = vmatprep.subr.bf16.mxu0 0
        %998 = vmatpush1.bf16.msra.mxu0 0
        %999 = vmatprep.subr.bf16.mxu0 0
        %1000 = vmatpush1.bf16.msra.mxu0 0
        %1001 = vmatprep.mubr.bf16.mxu0 0
        %1002 = vmatmul.mubr.bf16.gmra.mrb[0].mxu0 %v897
        %v1003 = vpop.f32.mrb[0].mxu0
        %v1004 = vadd.f32 %v919, %v1003
        %v1005 = vpop.f32.mrb[0].mxu0
        %v1006 = vpop.f32.mrb[0].mxu0
        %v1007 = vadd.f32 %v919, %v1006
        %v1008 = vpop.f32.mrb[0].mxu0
        %1009 = vdwg.mxu0
        %v1010 = vpack.c.bf16 %v1007, %v1004
        %v1011 = vld [vmem:[#allocation11] sm:$0xf]
        %v1012 = vld [vmem:[#allocation11 + $0x4] sm:$0xf]
        %v1013 = vld [vmem:[#allocation11 + $0x8] sm:$0xf]
        %v1014 = vld [vmem:[#allocation11 + $0xc] sm:$0xf]
        %v1015 = vld [vmem:[#allocation11 + $0x10] sm:$0xf]
        %v1016 = vld [vmem:[#allocation11 + $0x14] sm:$0xf]
        %v1017 = vld [vmem:[#allocation11 + $0x18] sm:$0xf]
        %v1018 = vld [vmem:[#allocation11 + $0x1c] sm:$0xf]
        %v1019 = vld [vmem:[#allocation11 + $0x20] sm:$0xf]
        %v1020 = vld [vmem:[#allocation11 + $0x24] sm:$0xf]
        %v1021 = vld [vmem:[#allocation11 + $0x28] sm:$0xf]
        %v1022 = vld [vmem:[#allocation11 + $0x2c] sm:$0xf]
        %v1023 = vld [vmem:[#allocation11 + $0x30] sm:$0xf]
        %v1024 = vld [vmem:[#allocation11 + $0x34] sm:$0xf]
        %v1025 = vld [vmem:[#allocation11 + $0x38] sm:$0xf]
        %v1026 = vld [vmem:[#allocation11 + $0x3c] sm:$0xf]
        %v1027 = vld [vmem:[%s10] sm:$0x1]
        %v1029 = vlaneseq
        %v1030 = vshrl.u32 %v1029, 7
        %v1031 = vsub.s32 0, %v1030
        %v1032 = vrot.slane %v1027, %v1031
        %v1050 = vunpack.c.l.b16 %v1011
        %v1051 = vunpack.c.l.b16 %v1012
        %v1052 = vunpack.c.l.b16 %v1013
        %v1053 = vunpack.c.l.b16 %v1014
        %v1054 = vunpack.c.l.b16 %v1015
        %v1055 = vunpack.c.l.b16 %v1016
        %v1056 = vunpack.c.l.b16 %v1017
        %v1057 = vunpack.c.l.b16 %v1018
        %v1058 = vunpack.c.l.b16 %v1019
        %v1059 = vunpack.c.l.b16 %v1020
        %v1060 = vunpack.c.l.b16 %v1021
        %v1061 = vunpack.c.l.b16 %v1022
        %v1062 = vunpack.c.l.b16 %v1023
        %v1063 = vunpack.c.l.b16 %v1024
        %v1064 = vunpack.c.l.b16 %v1025
        %v1065 = vunpack.c.l.b16 %v1026
        %v1066 = vpack.c.b16 %v1051, %v1050
        %v1067 = vpack.c.b16 %v1053, %v1052
        %v1068 = vpack.c.b16 %v1055, %v1054
        %v1069 = vpack.c.b16 %v1057, %v1056
        %v1070 = vpack.c.b16 %v1059, %v1058
        %v1071 = vpack.c.b16 %v1061, %v1060
        %v1072 = vpack.c.b16 %v1063, %v1062
        %v1073 = vpack.c.b16 %v1065, %v1064
        %1082 = vmatprep.subr.bf16.mxu0 0
        %1083 = vmatpush1.bf16.msra.mxu0 %v1066
        %1084 = vmatprep.subr.bf16.mxu0 0
        %1085 = vmatpush1.bf16.msra.mxu0 %v1067
        %1086 = vmatprep.subr.bf16.mxu0 0
        %1087 = vmatpush1.bf16.msra.mxu0 %v1068
        %1088 = vmatprep.subr.bf16.mxu0 0
        %1089 = vmatpush1.bf16.msra.mxu0 %v1069
        %1090 = vmatprep.subr.bf16.mxu0 0
        %1091 = vmatpush1.bf16.msra.mxu0 %v1070
        %1092 = vmatprep.subr.bf16.mxu0 0
        %1093 = vmatpush1.bf16.msra.mxu0 %v1071
        %1094 = vmatprep.subr.bf16.mxu0 0
        %1095 = vmatpush1.bf16.msra.mxu0 %v1072
        %1096 = vmatprep.subr.bf16.mxu0 0
        %1097 = vmatpush1.bf16.msra.mxu0 %v1073
        %1098 = vmatprep.subr.bf16.mxu0 0
        %1099 = vmatpush1.bf16.msra.mxu0 0
        %1100 = vmatprep.subr.bf16.mxu0 0
        %1101 = vmatpush1.bf16.msra.mxu0 0
        %1102 = vmatprep.subr.bf16.mxu0 0
        %1103 = vmatpush1.bf16.msra.mxu0 0
        %1104 = vmatprep.subr.bf16.mxu0 0
        %1105 = vmatpush1.bf16.msra.mxu0 0
        %1106 = vmatprep.subr.bf16.mxu0 0
        %1107 = vmatpush1.bf16.msra.mxu0 0
        %1108 = vmatprep.subr.bf16.mxu0 0
        %1109 = vmatpush1.bf16.msra.mxu0 0
        %1110 = vmatprep.subr.bf16.mxu0 0
        %1111 = vmatpush1.bf16.msra.mxu0 0
        %1112 = vmatprep.subr.bf16.mxu0 0
        %1113 = vmatpush1.bf16.msra.mxu0 0
        %1114 = vmatprep.mubr.bf16.mxu0 0
        %1115 = vmatmul.mubr.bf16.gmra.mrb[0].mxu0 %v1010
        %v1116 = vpop.f32.mrb[0].mxu0
        %v1117 = vadd.f32 %v1032, %v1116
        %v1118 = vpop.f32.mrb[0].mxu0
        %v1119 = vpop.f32.mrb[0].mxu0
        %v1120 = vadd.f32 %v1032, %v1119
        %v1121 = vpop.f32.mrb[0].mxu0
        %1122 = vdwg.mxu0
        %v1123 = vmax.f32 %v1117, 0.0
        %v1124 = vmax.f32 %v1120, 0.0
        %v1125 = vpack.c.bf16 %v1124, %v1123
        %v1126 = vld [vmem:[#allocation13] sm:$0xf]
        %v1127 = vld [vmem:[#allocation13 + $0x4] sm:$0xf]
        %v1128 = vld [vmem:[#allocation13 + $0x8] sm:$0xf]
        %v1129 = vld [vmem:[#allocation13 + $0xc] sm:$0xf]
        %v1130 = vld [vmem:[#allocation13 + $0x10] sm:$0xf]
        %v1131 = vld [vmem:[#allocation13 + $0x14] sm:$0xf]
        %v1132 = vld [vmem:[#allocation13 + $0x18] sm:$0xf]
        %v1133 = vld [vmem:[#allocation13 + $0x1c] sm:$0xf]
        %v1134 = vld [vmem:[#allocation13 + $0x20] sm:$0xf]
        %v1135 = vld [vmem:[#allocation13 + $0x24] sm:$0xf]
        %v1136 = vld [vmem:[#allocation13 + $0x28] sm:$0xf]
        %v1137 = vld [vmem:[#allocation13 + $0x2c] sm:$0xf]
        %v1138 = vld [vmem:[#allocation13 + $0x30] sm:$0xf]
        %v1139 = vld [vmem:[#allocation13 + $0x34] sm:$0xf]
        %v1140 = vld [vmem:[#allocation13 + $0x38] sm:$0xf]
        %v1141 = vld [vmem:[#allocation13 + $0x3c] sm:$0xf]
        %v1142 = vld [vmem:[%s12] sm:$0x1]
        %v1144 = vlaneseq
        %v1145 = vshrl.u32 %v1144, 7
        %v1146 = vsub.s32 0, %v1145
        %v1147 = vrot.slane %v1142, %v1146
        %v1165 = vunpack.c.l.b16 %v1126
        %v1166 = vunpack.c.l.b16 %v1127
        %v1167 = vunpack.c.l.b16 %v1128
        %v1168 = vunpack.c.l.b16 %v1129
        %v1169 = vunpack.c.l.b16 %v1130
        %v1170 = vunpack.c.l.b16 %v1131
        %v1171 = vunpack.c.l.b16 %v1132
        %v1172 = vunpack.c.l.b16 %v1133
        %v1173 = vunpack.c.l.b16 %v1134
        %v1174 = vunpack.c.l.b16 %v1135
        %v1175 = vunpack.c.l.b16 %v1136
        %v1176 = vunpack.c.l.b16 %v1137
        %v1177 = vunpack.c.l.b16 %v1138
        %v1178 = vunpack.c.l.b16 %v1139
        %v1179 = vunpack.c.l.b16 %v1140
        %v1180 = vunpack.c.l.b16 %v1141
        %v1181 = vpack.c.b16 %v1166, %v1165
        %v1182 = vpack.c.b16 %v1168, %v1167
        %v1183 = vpack.c.b16 %v1170, %v1169
        %v1184 = vpack.c.b16 %v1172, %v1171
        %v1185 = vpack.c.b16 %v1174, %v1173
        %v1186 = vpack.c.b16 %v1176, %v1175
        %v1187 = vpack.c.b16 %v1178, %v1177
        %v1188 = vpack.c.b16 %v1180, %v1179
        %1197 = vmatprep.subr.bf16.mxu0 0
        %1198 = vmatpush1.bf16.msra.mxu0 %v1181
        %1199 = vmatprep.subr.bf16.mxu0 0
        %1200 = vmatpush1.bf16.msra.mxu0 %v1182
        %1201 = vmatprep.subr.bf16.mxu0 0
        %1202 = vmatpush1.bf16.msra.mxu0 %v1183
        %1203 = vmatprep.subr.bf16.mxu0 0
        %1204 = vmatpush1.bf16.msra.mxu0 %v1184
        %1205 = vmatprep.subr.bf16.mxu0 0
        %1206 = vmatpush1.bf16.msra.mxu0 %v1185
        %1207 = vmatprep.subr.bf16.mxu0 0
        %1208 = vmatpush1.bf16.msra.mxu0 %v1186
        %1209 = vmatprep.subr.bf16.mxu0 0
        %1210 = vmatpush1.bf16.msra.mxu0 %v1187
        %1211 = vmatprep.subr.bf16.mxu0 0
        %1212 = vmatpush1.bf16.msra.mxu0 %v1188
        %1213 = vmatprep.subr.bf16.mxu0 0
        %1214 = vmatpush1.bf16.msra.mxu0 0
        %1215 = vmatprep.subr.bf16.mxu0 0
        %1216 = vmatpush1.bf16.msra.mxu0 0
        %1217 = vmatprep.subr.bf16.mxu0 0
        %1218 = vmatpush1.bf16.msra.mxu0 0
        %1219 = vmatprep.subr.bf16.mxu0 0
        %1220 = vmatpush1.bf16.msra.mxu0 0
        %1221 = vmatprep.subr.bf16.mxu0 0
        %1222 = vmatpush1.bf16.msra.mxu0 0
        %1223 = vmatprep.subr.bf16.mxu0 0
        %1224 = vmatpush1.bf16.msra.mxu0 0
        %1225 = vmatprep.subr.bf16.mxu0 0
        %1226 = vmatpush1.bf16.msra.mxu0 0
        %1227 = vmatprep.subr.bf16.mxu0 0
        %1228 = vmatpush1.bf16.msra.mxu0 0
        %1229 = vmatprep.mubr.bf16.mxu0 0
        %1230 = vmatmul.mubr.bf16.gmra.mrb[0].mxu0 %v1125
        %v1231 = vpop.f32.mrb[0].mxu0
        %v1232 = vadd.f32 %v1147, %v1231
        %v1233 = vpop.f32.mrb[0].mxu0
        %v1234 = vpop.f32.mrb[0].mxu0
        %v1235 = vadd.f32 %v1147, %v1234
        %v1236 = vpop.f32.mrb[0].mxu0
        %1237 = vdwg.mxu0
        %v1238 = vsub.f32 0.0, %v1232
        %v1239 = vsub.f32 0.0, %v1235
        %v1240 = vmul.f32 %v1238, 1.442695
        %v1241 = vpow.pop %v1240
        %v1242 = vmul.f32 %v1239, 1.442695
        %v1243 = vpow.pop %v1242
        %v1244 = vadd.f32 %v1241, 1.0
        %v1245 = vadd.f32 %v1243, 1.0
        %v1246 = vrcp.pop %v1244
        %v1247 = vrcp.pop %v1245
        %1248 = vst [vmem:[%s545] sm:$0xff] %v1246
        %1249 = vst [vmem:[%s545 + $0x8] sm:$0xff] %v1247
        %s1250 = sand.u32 %s319, 1
        %s1251 = scalar_lea.sflag [#allocation4], %s1250
        %s1252 = sand.u32 %s319, 1
        %s1253 = smul.addr %s1252, 16
        %s1254 = scalar_lea.vmem [#allocation14], %s1253
        // Predicated region
        $region101: #{tpu_custom_call.1} parent=71 // pred_check
          %p1255 = pneg %p329
        $region102: #{tpu_custom_call.1} parent=71 // pred_check_branch
          %1257 = sbr.rel (%p1255) target = $region104
        $region103: #{tpu_custom_call.1} parent=71 // pred_region
          %s1258 = smul.u32 2, %s33
          %s1260 = ssub.s32 256, 256
          %1261 = vsyncadd %s1251, %s1260
          %s1262 = smul.addr %s1258, 128
          %s1263 = scalar_lea.hbm %s13, %s1262
          %s1264 = sshll.u32 %s1254, 4
          %s1265 = int_to_ptr.vmem [resolvable:$true] %s1264
          %1270 = dma.vmem_to_hbm [thread:$0]  %s1265, 256, %s1263, %s1251, 128, 128, 8
        $region104: #{tpu_custom_call.1} parent=71 // pred_fallthru
          _
      $region72: #{tpu_custom_call.1} parent=5 // pred_fallthru
        _
      %p1271 = scmp.le.s32.totalorder 2, %s28
      // Predicated region
      $region105: #{tpu_custom_call.1} parent=5 // pred_check
        %p1272 = pneg %p1271
      $region106: #{tpu_custom_call.1} parent=5 // pred_check_branch
        %1274 = sbr.rel (%p1272) target = $region108
      $region107: #{tpu_custom_call.1} parent=5 // pred_region
        %s1275 = ssub.s32 %s28, 2
        // Predicated region
        $region109: #{tpu_custom_call.1} parent=107 // pred_check
          %p1276 = pneg %p335
        $region110: #{tpu_custom_call.1} parent=107 // pred_check_branch
          %1278 = sbr.rel (%p1276) target = $region112
        $region111: #{tpu_custom_call.1} parent=107 // pred_region
          %s1279 = sand.u32 %s320, 1
          %s1280 = scalar_lea.sflag [#allocation4], %s1279
          %s1281 = sand.u32 %s320, 1
          %s1282 = smul.addr %s1281, 16
          %s1283 = scalar_lea.vmem [#allocation14], %s1282
          %1284 = dma.done %s1280, 256
        $region112: #{tpu_custom_call.1} parent=107 // pred_fallthru
          _
      $region108: #{tpu_custom_call.1} parent=5 // pred_fallthru
        _
    $region6: #{tpu_custom_call.1} parent=1 // loop_footer
      %s32 = sadd.s32 1, %s28
    $region7: #{tpu_custom_call.1} parent=1 // loop_footer_branch
      %27 = sbr.rel target = $region3
    $region8: #{tpu_custom_call.1} parent=1 // loop_exit
      _
    %1285 = vsyncpa [#allocation3], 1
    %s1286 = scalar_lea.sflag [#allocation3], 1
    %1287 = vsyncpa %s1286, 1
    %1288 = vsyncpa [#allocation6], 1
    %1289 = vsyncpa [#allocation9], 1
    %1290 = vsyncpa [#allocation12], 1
    %1291 = vsyncpa [#allocation4], 1
    %s1292 = scalar_lea.sflag [#allocation4], 1
    %1293 = vsyncpa %s1292, 1

</llo_original>
